<compile_context>
chip_gen: v7x
topology: tpu7x:2x2x1
jax: 0.10.0
libtpu: 0.0.40
codegen_flags: <defaults>
</compile_context>

<pallas_src>
import jax
import jax.numpy as jnp
from jax.experimental import pallas as pl
from jax.experimental.pallas import tpu as pltpu

NEURONS = 256
NUM_CLASSES = 10
NUM_CLASSES_PAD = 128          # lane-dense padded class dim (sliced back to 10 in glue)
C_IN = 1
IN_FEATURES = 28 * 28 * C_IN   # 784
IN_FEATURES_PAD = 896          # 7 * 128
BN_EPS = 1e-5
NUM_LAYERS = 6


def _round_up(x, m):
    return ((x + m - 1) // m) * m


def _binarize_host(v):
    # Deterministic BNN binarization: sign(), with 0 mapping to +1 (standard BNN convention;
    # differs from torch.sign(0)==0 — intended).
    return jnp.where(v >= 0, 1.0, -1.0).astype(jnp.float32)


def binmlp_kernel(x_ref, *refs):
    """Whole-network kernel for one batch tile; all weights resident in VMEM.

    refs = 6 layers x (w_ref, bn_scale_ref, bn_shift_ref), then out_ref.
    Weights arrive already binarized (+/-1; zero K-pad rows for layer 0).
    Bias is pre-folded into the BN shift.
    """
    out_ref = refs[-1]
    params = refs[:-1]

    # ---- Layer 0: raw (non-binarized) input, f32 MXU pass (K padded to 896 with zeros).
    h = x_ref[...]                                   # (TB, 896) f32
    w0, s0, t0 = params[0:3]
    z = jnp.dot(h, w0[...], preferred_element_type=jnp.float32)
    h = z * s0[...] + t0[...]                        # folded BatchNorm1d (eval) + bias
    # Hardtanh dropped: next layer binarizes, sign(clip(z,-1,1)) == sign(z).

    # ---- Layers 1..5: binarized activations, bf16 MXU operands, f32 accumulation.
    for li in range(1, NUM_LAYERS):
        w_ref, s_ref, t_ref = params[3 * li: 3 * li + 3]
        hb = jnp.where(h >= 0, 1.0, -1.0).astype(jnp.bfloat16)   # sign in f32, cast MXU operand
        z = jnp.dot(hb, w_ref[...], preferred_element_type=jnp.float32)
        h = z * s_ref[...] + t_ref[...]
        # Hardtanh dropped for layers 1-4 (dead under next-layer binarization);
        # layer 5 has no Hardtanh in the reference module.

    # ---- nn.Softmax() over the class axis (dim=1).  Padding columns carry shift=-1e30,
    #      so exp underflows to exactly 0 and the real 10-way softmax is unchanged.
    m = jnp.max(h, axis=-1, keepdims=True)
    e = jnp.exp(h - m)
    out_ref[...] = (e / jnp.sum(e, axis=-1, keepdims=True)).astype(out_ref.dtype)


def binmlp_forward(x, params, *, batch_tile=256):
    """x: (B, C, H, W) float32, NCHW as in PyTorch. Returns (B, NUM_CLASSES) softmax probs."""
    B = x.shape[0]
    x2 = x.reshape(B, -1).astype(jnp.float32)        # glue: torch.flatten(x, 1)
    assert x2.shape[1] == IN_FEATURES

    # Zero-pad K: 784 -> 896 (contributes 0 to the layer-0 matmul).
    x2 = jnp.pad(x2, ((0, 0), (0, IN_FEATURES_PAD - IN_FEATURES)))

    # Batch tiling: largest tile that evenly covers the (padded) batch.
    TB = batch_tile if B >= batch_tile else _round_up(B, 8)
    B_pad = _round_up(B, TB)
    if B_pad != B:
        x2 = jnp.pad(x2, ((0, B_pad - B), (0, 0)))
    nb = B_pad // TB

    # ---- Host-side parameter preprocessing (pure glue; weights are static).
    flat = []
    in_specs = [pl.BlockSpec((TB, IN_FEATURES_PAD), lambda i: (i, 0))]
    for li, (w, b, scale, shift) in enumerate(params):
        wb = _binarize_host(w)                       # pre-binarized +/-1
        shift2 = (b * scale + shift).astype(jnp.float32)   # fold Linear bias into BN shift
        scale = scale.astype(jnp.float32)
        if li == 0:
            # K-pad with zero rows; keep f32 (raw f32 input feeds this matmul).
            wb = jnp.pad(wb, ((0, IN_FEATURES_PAD - IN_FEATURES), (0, 0)))
        elif li == NUM_LAYERS - 1:
            # Pad class dim to 128 (lane-dense output); padding logits forced to -1e30.
            pad = NUM_CLASSES_PAD - NUM_CLASSES
            wb = jnp.pad(wb, ((0, 0), (0, pad))).astype(jnp.bfloat16)
            scale = jnp.pad(scale, (0, pad), constant_values=1.0)
            shift2 = jnp.pad(shift2, (0, pad), constant_values=-1e30)
        else:
            wb = wb.astype(jnp.bfloat16)             # +/-1 exact in bf16
        fi, fo = wb.shape
        flat += [wb, scale.reshape(1, -1), shift2.reshape(1, -1)]
        in_specs += [
            pl.BlockSpec((fi, fo), lambda i: (0, 0)),   # weights stay VMEM-resident
            pl.BlockSpec((1, fo), lambda i: (0, 0)),
            pl.BlockSpec((1, fo), lambda i: (0, 0)),
        ]

    out = pl.pallas_call(
        binmlp_kernel,
        out_shape=jax.ShapeDtypeStruct((B_pad, NUM_CLASSES_PAD), jnp.float32),
        grid_spec=pltpu.PrefetchScalarGridSpec(
            num_scalar_prefetch=0,
            grid=(nb,),
            in_specs=in_specs,
            out_specs=pl.BlockSpec((TB, NUM_CLASSES_PAD), lambda i: (i, 0)),
        ),
        compiler_params=pltpu.CompilerParams(
            dimension_semantics=("parallel",),       # shards batch tiles across TCs on v7x
        ),
    )(x2, *flat)

    return out[:B, :NUM_CLASSES]


def init_params(key):
    """Deterministic synthetic parameters (Linear weights/bias + folded BN scale/shift)."""
    dims = [(IN_FEATURES, NEURONS)] + [(NEURONS, NEURONS)] * 4 + [(NEURONS, NUM_CLASSES)]
    params = []
    for (fi, fo) in dims:
        key, kw, kb, kg, kbe, km, kv = jax.random.split(key, 7)
        bound = 1.0 / jnp.sqrt(jnp.float32(fi))
        w = jax.random.uniform(kw, (fi, fo), jnp.float32, -bound, bound)
        b = jax.random.uniform(kb, (fo,), jnp.float32, -bound, bound)
        gamma = jax.random.uniform(kg, (fo,), jnp.float32, 0.5, 1.5)
        beta = jax.random.uniform(kbe, (fo,), jnp.float32, -0.1, 0.1)
        rmean = jax.random.uniform(km, (fo,), jnp.float32, -0.1, 0.1)
        rvar = jax.random.uniform(kv, (fo,), jnp.float32, 0.5, 1.5)
        scale = gamma / jnp.sqrt(rvar + BN_EPS)
        shift = beta - rmean * scale
        params.append((w, b, scale, shift))
    return params


if __name__ == "__main__":
    key = jax.random.PRNGKey(0)
    kp, kx = jax.random.split(key)
    params = init_params(kp)

    # MNIST-like input: batch=8, c_in=1, 28x28 (NCHW, matching the PyTorch module).
    x = jax.random.normal(kx, (8, C_IN, 28, 28), jnp.float32)

    out = binmlp_forward(x, params)
    jax.block_until_ready(out)

    assert out.shape == (8, NUM_CLASSES)
    # Softmax rows should sum to ~1.
    assert bool(jnp.allclose(jnp.sum(out, axis=-1), 1.0, atol=1e-5))
    print("KERNEL_OK")
</pallas_src>

<mosaic_0001>
module attributes {stable_mosaic.version = 11 : i64} {
  func.func @binmlp_kernel(%arg0: i32, %arg1: memref<8x896xf32, #tpu.memory_space<vmem>>, %arg2: memref<896x256xf32, #tpu.memory_space<vmem>>, %arg3: memref<1x256xf32, #tpu.memory_space<vmem>>, %arg4: memref<1x256xf32, #tpu.memory_space<vmem>>, %arg5: memref<256x256xbf16, #tpu.memory_space<vmem>>, %arg6: memref<1x256xf32, #tpu.memory_space<vmem>>, %arg7: memref<1x256xf32, #tpu.memory_space<vmem>>, %arg8: memref<256x256xbf16, #tpu.memory_space<vmem>>, %arg9: memref<1x256xf32, #tpu.memory_space<vmem>>, %arg10: memref<1x256xf32, #tpu.memory_space<vmem>>, %arg11: memref<256x256xbf16, #tpu.memory_space<vmem>>, %arg12: memref<1x256xf32, #tpu.memory_space<vmem>>, %arg13: memref<1x256xf32, #tpu.memory_space<vmem>>, %arg14: memref<256x256xbf16, #tpu.memory_space<vmem>>, %arg15: memref<1x256xf32, #tpu.memory_space<vmem>>, %arg16: memref<1x256xf32, #tpu.memory_space<vmem>>, %arg17: memref<256x128xbf16, #tpu.memory_space<vmem>>, %arg18: memref<1x128xf32, #tpu.memory_space<vmem>>, %arg19: memref<1x128xf32, #tpu.memory_space<vmem>>, %arg20: memref<8x128xf32, #tpu.memory_space<vmem>>) attributes {dimension_semantics = [#tpu.dimension_semantics<parallel>], iteration_bounds = array<i64: 1>, scalar_prefetch = 0 : i64, scratch_operands = 0 : i64, tpu.core_type = #tpu.core_type<tc>, window_params = [{transform_indices = @transform_0, window_bounds = array<i64: 8, 896>}, {pipeline_mode = #tpu.pipeline_mode<synchronous>, transform_indices = @transform_1, window_bounds = array<i64: 896, 256>}, {pipeline_mode = #tpu.pipeline_mode<synchronous>, transform_indices = @transform_2, window_bounds = array<i64: 1, 256>}, {pipeline_mode = #tpu.pipeline_mode<synchronous>, transform_indices = @transform_3, window_bounds = array<i64: 1, 256>}, {pipeline_mode = #tpu.pipeline_mode<synchronous>, transform_indices = @transform_4, window_bounds = array<i64: 256, 256>}, {pipeline_mode = #tpu.pipeline_mode<synchronous>, transform_indices = @transform_5, window_bounds = array<i64: 1, 256>}, {pipeline_mode = #tpu.pipeline_mode<synchronous>, transform_indices = @transform_6, window_bounds = array<i64: 1, 256>}, {pipeline_mode = #tpu.pipeline_mode<synchronous>, transform_indices = @transform_7, window_bounds = array<i64: 256, 256>}, {pipeline_mode = #tpu.pipeline_mode<synchronous>, transform_indices = @transform_8, window_bounds = array<i64: 1, 256>}, {pipeline_mode = #tpu.pipeline_mode<synchronous>, transform_indices = @transform_9, window_bounds = array<i64: 1, 256>}, {pipeline_mode = #tpu.pipeline_mode<synchronous>, transform_indices = @transform_10, window_bounds = array<i64: 256, 256>}, {pipeline_mode = #tpu.pipeline_mode<synchronous>, transform_indices = @transform_11, window_bounds = array<i64: 1, 256>}, {pipeline_mode = #tpu.pipeline_mode<synchronous>, transform_indices = @transform_12, window_bounds = array<i64: 1, 256>}, {pipeline_mode = #tpu.pipeline_mode<synchronous>, transform_indices = @transform_13, window_bounds = array<i64: 256, 256>}, {pipeline_mode = #tpu.pipeline_mode<synchronous>, transform_indices = @transform_14, window_bounds = array<i64: 1, 256>}, {pipeline_mode = #tpu.pipeline_mode<synchronous>, transform_indices = @transform_15, window_bounds = array<i64: 1, 256>}, {pipeline_mode = #tpu.pipeline_mode<synchronous>, transform_indices = @transform_16, window_bounds = array<i64: 256, 128>}, {pipeline_mode = #tpu.pipeline_mode<synchronous>, transform_indices = @transform_17, window_bounds = array<i64: 1, 128>}, {pipeline_mode = #tpu.pipeline_mode<synchronous>, transform_indices = @transform_18, window_bounds = array<i64: 1, 128>}, {transform_indices = @transform_19, window_bounds = array<i64: 8, 128>}]} {
    %c0 = arith.constant 0 : index
    %c0_0 = arith.constant 0 : index
    %0 = vector.load %arg1[%c0, %c0_0] : memref<8x896xf32, #tpu.memory_space<vmem>>, vector<8x896xf32>
    %c0_1 = arith.constant 0 : index
    %c0_2 = arith.constant 0 : index
    %1 = vector.load %arg2[%c0_1, %c0_2] : memref<896x256xf32, #tpu.memory_space<vmem>>, vector<896x256xf32>
    %cst = arith.constant dense<0.000000e+00> : vector<8x256xf32>
    %2 = tpu.matmul %0, %1, %cst {dimension_numbers = #tpu.dot_dimension_numbers<[1], [0], [0], [1], [0, 0, 1, 1], [], []>} : vector<8x896xf32>, vector<896x256xf32>, vector<8x256xf32> -> vector<8x256xf32>
    %c0_3 = arith.constant 0 : index
    %c0_4 = arith.constant 0 : index
    %3 = vector.load %arg3[%c0_3, %c0_4] : memref<1x256xf32, #tpu.memory_space<vmem>>, vector<1x256xf32>
    %4 = vector.broadcast %3 : vector<1x256xf32> to vector<8x256xf32>
    %5 = arith.mulf %2, %4 : vector<8x256xf32>
    %c0_5 = arith.constant 0 : index
    %c0_6 = arith.constant 0 : index
    %6 = vector.load %arg4[%c0_5, %c0_6] : memref<1x256xf32, #tpu.memory_space<vmem>>, vector<1x256xf32>
    %7 = vector.broadcast %6 : vector<1x256xf32> to vector<8x256xf32>
    %8 = arith.addf %5, %7 : vector<8x256xf32>
    %cst_7 = arith.constant 0.000000e+00 : f32
    %9 = vector.broadcast %cst_7 : f32 to vector<8x256xf32>
    %10 = arith.cmpf oge, %8, %9 : vector<8x256xf32>
    %cst_8 = arith.constant 1.000000e+00 : f32
    %cst_9 = arith.constant -1.000000e+00 : f32
    %11 = vector.broadcast %cst_8 : f32 to vector<8x256xf32>
    %12 = vector.broadcast %cst_9 : f32 to vector<8x256xf32>
    %13 = arith.select %10, %11, %12 : vector<8x256xi1>, vector<8x256xf32>
    %14 = arith.truncf %13 : vector<8x256xf32> to vector<8x256xbf16>
    %c0_10 = arith.constant 0 : index
    %c0_11 = arith.constant 0 : index
    %15 = vector.load %arg5[%c0_10, %c0_11] : memref<256x256xbf16, #tpu.memory_space<vmem>>, vector<256x256xbf16>
    %cst_12 = arith.constant dense<0.000000e+00> : vector<8x256xf32>
    %16 = tpu.matmul %14, %15, %cst_12 {dimension_numbers = #tpu.dot_dimension_numbers<[1], [0], [0], [1], [0, 0, 1, 1], [], []>} : vector<8x256xbf16>, vector<256x256xbf16>, vector<8x256xf32> -> vector<8x256xf32>
    %c0_13 = arith.constant 0 : index
    %c0_14 = arith.constant 0 : index
    %17 = vector.load %arg6[%c0_13, %c0_14] : memref<1x256xf32, #tpu.memory_space<vmem>>, vector<1x256xf32>
    %18 = vector.broadcast %17 : vector<1x256xf32> to vector<8x256xf32>
    %19 = arith.mulf %16, %18 : vector<8x256xf32>
    %c0_15 = arith.constant 0 : index
    %c0_16 = arith.constant 0 : index
    %20 = vector.load %arg7[%c0_15, %c0_16] : memref<1x256xf32, #tpu.memory_space<vmem>>, vector<1x256xf32>
    %21 = vector.broadcast %20 : vector<1x256xf32> to vector<8x256xf32>
    %22 = arith.addf %19, %21 : vector<8x256xf32>
    %cst_17 = arith.constant 0.000000e+00 : f32
    %23 = vector.broadcast %cst_17 : f32 to vector<8x256xf32>
    %24 = arith.cmpf oge, %22, %23 : vector<8x256xf32>
    %cst_18 = arith.constant 1.000000e+00 : f32
    %cst_19 = arith.constant -1.000000e+00 : f32
    %25 = vector.broadcast %cst_18 : f32 to vector<8x256xf32>
    %26 = vector.broadcast %cst_19 : f32 to vector<8x256xf32>
    %27 = arith.select %24, %25, %26 : vector<8x256xi1>, vector<8x256xf32>
    %28 = arith.truncf %27 : vector<8x256xf32> to vector<8x256xbf16>
    %c0_20 = arith.constant 0 : index
    %c0_21 = arith.constant 0 : index
    %29 = vector.load %arg8[%c0_20, %c0_21] : memref<256x256xbf16, #tpu.memory_space<vmem>>, vector<256x256xbf16>
    %cst_22 = arith.constant dense<0.000000e+00> : vector<8x256xf32>
    %30 = tpu.matmul %28, %29, %cst_22 {dimension_numbers = #tpu.dot_dimension_numbers<[1], [0], [0], [1], [0, 0, 1, 1], [], []>} : vector<8x256xbf16>, vector<256x256xbf16>, vector<8x256xf32> -> vector<8x256xf32>
    %c0_23 = arith.constant 0 : index
    %c0_24 = arith.constant 0 : index
    %31 = vector.load %arg9[%c0_23, %c0_24] : memref<1x256xf32, #tpu.memory_space<vmem>>, vector<1x256xf32>
    %32 = vector.broadcast %31 : vector<1x256xf32> to vector<8x256xf32>
    %33 = arith.mulf %30, %32 : vector<8x256xf32>
    %c0_25 = arith.constant 0 : index
    %c0_26 = arith.constant 0 : index
    %34 = vector.load %arg10[%c0_25, %c0_26] : memref<1x256xf32, #tpu.memory_space<vmem>>, vector<1x256xf32>
    %35 = vector.broadcast %34 : vector<1x256xf32> to vector<8x256xf32>
    %36 = arith.addf %33, %35 : vector<8x256xf32>
    %cst_27 = arith.constant 0.000000e+00 : f32
    %37 = vector.broadcast %cst_27 : f32 to vector<8x256xf32>
    %38 = arith.cmpf oge, %36, %37 : vector<8x256xf32>
    %cst_28 = arith.constant 1.000000e+00 : f32
    %cst_29 = arith.constant -1.000000e+00 : f32
    %39 = vector.broadcast %cst_28 : f32 to vector<8x256xf32>
    %40 = vector.broadcast %cst_29 : f32 to vector<8x256xf32>
    %41 = arith.select %38, %39, %40 : vector<8x256xi1>, vector<8x256xf32>
    %42 = arith.truncf %41 : vector<8x256xf32> to vector<8x256xbf16>
    %c0_30 = arith.constant 0 : index
    %c0_31 = arith.constant 0 : index
    %43 = vector.load %arg11[%c0_30, %c0_31] : memref<256x256xbf16, #tpu.memory_space<vmem>>, vector<256x256xbf16>
    %cst_32 = arith.constant dense<0.000000e+00> : vector<8x256xf32>
    %44 = tpu.matmul %42, %43, %cst_32 {dimension_numbers = #tpu.dot_dimension_numbers<[1], [0], [0], [1], [0, 0, 1, 1], [], []>} : vector<8x256xbf16>, vector<256x256xbf16>, vector<8x256xf32> -> vector<8x256xf32>
    %c0_33 = arith.constant 0 : index
    %c0_34 = arith.constant 0 : index
    %45 = vector.load %arg12[%c0_33, %c0_34] : memref<1x256xf32, #tpu.memory_space<vmem>>, vector<1x256xf32>
    %46 = vector.broadcast %45 : vector<1x256xf32> to vector<8x256xf32>
    %47 = arith.mulf %44, %46 : vector<8x256xf32>
    %c0_35 = arith.constant 0 : index
    %c0_36 = arith.constant 0 : index
    %48 = vector.load %arg13[%c0_35, %c0_36] : memref<1x256xf32, #tpu.memory_space<vmem>>, vector<1x256xf32>
    %49 = vector.broadcast %48 : vector<1x256xf32> to vector<8x256xf32>
    %50 = arith.addf %47, %49 : vector<8x256xf32>
    %cst_37 = arith.constant 0.000000e+00 : f32
    %51 = vector.broadcast %cst_37 : f32 to vector<8x256xf32>
    %52 = arith.cmpf oge, %50, %51 : vector<8x256xf32>
    %cst_38 = arith.constant 1.000000e+00 : f32
    %cst_39 = arith.constant -1.000000e+00 : f32
    %53 = vector.broadcast %cst_38 : f32 to vector<8x256xf32>
    %54 = vector.broadcast %cst_39 : f32 to vector<8x256xf32>
    %55 = arith.select %52, %53, %54 : vector<8x256xi1>, vector<8x256xf32>
    %56 = arith.truncf %55 : vector<8x256xf32> to vector<8x256xbf16>
    %c0_40 = arith.constant 0 : index
    %c0_41 = arith.constant 0 : index
    %57 = vector.load %arg14[%c0_40, %c0_41] : memref<256x256xbf16, #tpu.memory_space<vmem>>, vector<256x256xbf16>
    %cst_42 = arith.constant dense<0.000000e+00> : vector<8x256xf32>
    %58 = tpu.matmul %56, %57, %cst_42 {dimension_numbers = #tpu.dot_dimension_numbers<[1], [0], [0], [1], [0, 0, 1, 1], [], []>} : vector<8x256xbf16>, vector<256x256xbf16>, vector<8x256xf32> -> vector<8x256xf32>
    %c0_43 = arith.constant 0 : index
    %c0_44 = arith.constant 0 : index
    %59 = vector.load %arg15[%c0_43, %c0_44] : memref<1x256xf32, #tpu.memory_space<vmem>>, vector<1x256xf32>
    %60 = vector.broadcast %59 : vector<1x256xf32> to vector<8x256xf32>
    %61 = arith.mulf %58, %60 : vector<8x256xf32>
    %c0_45 = arith.constant 0 : index
    %c0_46 = arith.constant 0 : index
    %62 = vector.load %arg16[%c0_45, %c0_46] : memref<1x256xf32, #tpu.memory_space<vmem>>, vector<1x256xf32>
    %63 = vector.broadcast %62 : vector<1x256xf32> to vector<8x256xf32>
    %64 = arith.addf %61, %63 : vector<8x256xf32>
    %cst_47 = arith.constant 0.000000e+00 : f32
    %65 = vector.broadcast %cst_47 : f32 to vector<8x256xf32>
    %66 = arith.cmpf oge, %64, %65 : vector<8x256xf32>
    %cst_48 = arith.constant 1.000000e+00 : f32
    %cst_49 = arith.constant -1.000000e+00 : f32
    %67 = vector.broadcast %cst_48 : f32 to vector<8x256xf32>
    %68 = vector.broadcast %cst_49 : f32 to vector<8x256xf32>
    %69 = arith.select %66, %67, %68 : vector<8x256xi1>, vector<8x256xf32>
    %70 = arith.truncf %69 : vector<8x256xf32> to vector<8x256xbf16>
    %c0_50 = arith.constant 0 : index
    %c0_51 = arith.constant 0 : index
    %71 = vector.load %arg17[%c0_50, %c0_51] : memref<256x128xbf16, #tpu.memory_space<vmem>>, vector<256x128xbf16>
    %cst_52 = arith.constant dense<0.000000e+00> : vector<8x128xf32>
    %72 = tpu.matmul %70, %71, %cst_52 {dimension_numbers = #tpu.dot_dimension_numbers<[1], [0], [0], [1], [0, 0, 1, 1], [], []>} : vector<8x256xbf16>, vector<256x128xbf16>, vector<8x128xf32> -> vector<8x128xf32>
    %c0_53 = arith.constant 0 : index
    %c0_54 = arith.constant 0 : index
    %73 = vector.load %arg18[%c0_53, %c0_54] : memref<1x128xf32, #tpu.memory_space<vmem>>, vector<1x128xf32>
    %74 = vector.broadcast %73 : vector<1x128xf32> to vector<8x128xf32>
    %75 = arith.mulf %72, %74 : vector<8x128xf32>
    %c0_55 = arith.constant 0 : index
    %c0_56 = arith.constant 0 : index
    %76 = vector.load %arg19[%c0_55, %c0_56] : memref<1x128xf32, #tpu.memory_space<vmem>>, vector<1x128xf32>
    %77 = vector.broadcast %76 : vector<1x128xf32> to vector<8x128xf32>
    %78 = arith.addf %75, %77 : vector<8x128xf32>
    %cst_57 = arith.constant dense<0xFF800000> : vector<8xf32>
    %79 = vector.multi_reduction <maximumf>, %78, %cst_57 [1] : vector<8x128xf32> to vector<8xf32>
    %80 = vector.shape_cast %79 : vector<8xf32> to vector<8x1xf32>
    %81 = vector.broadcast %80 : vector<8x1xf32> to vector<8x128xf32>
    %82 = arith.subf %78, %81 : vector<8x128xf32>
    %83 = math.exp %82 : vector<8x128xf32>
    %cst_58 = arith.constant dense<0.000000e+00> : vector<8xf32>
    %84 = vector.multi_reduction <add>, %83, %cst_58 [1] : vector<8x128xf32> to vector<8xf32>
    %85 = vector.shape_cast %84 : vector<8xf32> to vector<8x1xf32>
    %86 = vector.broadcast %85 : vector<8x1xf32> to vector<8x128xf32>
    %87 = arith.divf %83, %86 : vector<8x128xf32>
    %c0_59 = arith.constant 0 : index
    %c0_60 = arith.constant 0 : index
    %88 = vector.load %arg20[%c0_59, %c0_60] : memref<8x128xf32, #tpu.memory_space<vmem>>, vector<8x128xf32>
    tpu.vector_store %arg20[%c0_59, %c0_60], %87 {strides = array<i32>} : memref<8x128xf32, #tpu.memory_space<vmem>>, vector<8x128xf32>,
    return
  }
  func.func @transform_0(%arg0: i32) -> (i32, i32) {
    %c0_i32 = arith.constant 0 : i32
    %c0_i32_0 = arith.constant 0 : i32
    return %arg0, %c0_i32 : i32, i32
  }
  func.func @transform_1(%arg0: i32) -> (i32, i32) {
    %c0_i32 = arith.constant 0 : i32
    %c0_i32_0 = arith.constant 0 : i32
    %c0_i32_1 = arith.constant 0 : i32
    return %c0_i32, %c0_i32_0 : i32, i32
  }
  func.func @transform_2(%arg0: i32) -> (i32, i32) {
    %c0_i32 = arith.constant 0 : i32
    %c0_i32_0 = arith.constant 0 : i32
    %c0_i32_1 = arith.constant 0 : i32
    return %c0_i32, %c0_i32_0 : i32, i32
  }
  func.func @transform_3(%arg0: i32) -> (i32, i32) {
    %c0_i32 = arith.constant 0 : i32
    %c0_i32_0 = arith.constant 0 : i32
    %c0_i32_1 = arith.constant 0 : i32
    return %c0_i32, %c0_i32_0 : i32, i32
  }
  func.func @transform_4(%arg0: i32) -> (i32, i32) {
    %c0_i32 = arith.constant 0 : i32
    %c0_i32_0 = arith.constant 0 : i32
    %c0_i32_1 = arith.constant 0 : i32
    return %c0_i32, %c0_i32_0 : i32, i32
  }
  func.func @transform_5(%arg0: i32) -> (i32, i32) {
    %c0_i32 = arith.constant 0 : i32
    %c0_i32_0 = arith.constant 0 : i32
    %c0_i32_1 = arith.constant 0 : i32
    return %c0_i32, %c0_i32_0 : i32, i32
  }
  func.func @transform_6(%arg0: i32) -> (i32, i32) {
    %c0_i32 = arith.constant 0 : i32
    %c0_i32_0 = arith.constant 0 : i32
    %c0_i32_1 = arith.constant 0 : i32
    return %c0_i32, %c0_i32_0 : i32, i32
  }
  func.func @transform_7(%arg0: i32) -> (i32, i32) {
    %c0_i32 = arith.constant 0 : i32
    %c0_i32_0 = arith.constant 0 : i32
    %c0_i32_1 = arith.constant 0 : i32
    return %c0_i32, %c0_i32_0 : i32, i32
  }
  func.func @transform_8(%arg0: i32) -> (i32, i32) {
    %c0_i32 = arith.constant 0 : i32
    %c0_i32_0 = arith.constant 0 : i32
    %c0_i32_1 = arith.constant 0 : i32
    return %c0_i32, %c0_i32_0 : i32, i32
  }
  func.func @transform_9(%arg0: i32) -> (i32, i32) {
    %c0_i32 = arith.constant 0 : i32
    %c0_i32_0 = arith.constant 0 : i32
    %c0_i32_1 = arith.constant 0 : i32
    return %c0_i32, %c0_i32_0 : i32, i32
  }
  func.func @transform_10(%arg0: i32) -> (i32, i32) {
    %c0_i32 = arith.constant 0 : i32
    %c0_i32_0 = arith.constant 0 : i32
    %c0_i32_1 = arith.constant 0 : i32
    return %c0_i32, %c0_i32_0 : i32, i32
  }
  func.func @transform_11(%arg0: i32) -> (i32, i32) {
    %c0_i32 = arith.constant 0 : i32
    %c0_i32_0 = arith.constant 0 : i32
    %c0_i32_1 = arith.constant 0 : i32
    return %c0_i32, %c0_i32_0 : i32, i32
  }
  func.func @transform_12(%arg0: i32) -> (i32, i32) {
    %c0_i32 = arith.constant 0 : i32
    %c0_i32_0 = arith.constant 0 : i32
    %c0_i32_1 = arith.constant 0 : i32
    return %c0_i32, %c0_i32_0 : i32, i32
  }
  func.func @transform_13(%arg0: i32) -> (i32, i32) {
    %c0_i32 = arith.constant 0 : i32
    %c0_i32_0 = arith.constant 0 : i32
    %c0_i32_1 = arith.constant 0 : i32
    return %c0_i32, %c0_i32_0 : i32, i32
  }
  func.func @transform_14(%arg0: i32) -> (i32, i32) {
    %c0_i32 = arith.constant 0 : i32
    %c0_i32_0 = arith.constant 0 : i32
    %c0_i32_1 = arith.constant 0 : i32
    return %c0_i32, %c0_i32_0 : i32, i32
  }
  func.func @transform_15(%arg0: i32) -> (i32, i32) {
    %c0_i32 = arith.constant 0 : i32
    %c0_i32_0 = arith.constant 0 : i32
    %c0_i32_1 = arith.constant 0 : i32
    return %c0_i32, %c0_i32_0 : i32, i32
  }
  func.func @transform_16(%arg0: i32) -> (i32, i32) {
    %c0_i32 = arith.constant 0 : i32
    %c0_i32_0 = arith.constant 0 : i32
    %c0_i32_1 = arith.constant 0 : i32
    return %c0_i32, %c0_i32_0 : i32, i32
  }
  func.func @transform_17(%arg0: i32) -> (i32, i32) {
    %c0_i32 = arith.constant 0 : i32
    %c0_i32_0 = arith.constant 0 : i32
    %c0_i32_1 = arith.constant 0 : i32
    return %c0_i32, %c0_i32_0 : i32, i32
  }
  func.func @transform_18(%arg0: i32) -> (i32, i32) {
    %c0_i32 = arith.constant 0 : i32
    %c0_i32_0 = arith.constant 0 : i32
    %c0_i32_1 = arith.constant 0 : i32
    return %c0_i32, %c0_i32_0 : i32, i32
  }
  func.func @transform_19(%arg0: i32) -> (i32, i32) {
    %c0_i32 = arith.constant 0 : i32
    %c0_i32_0 = arith.constant 0 : i32
    return %arg0, %c0_i32 : i32, i32
  }
}

</mosaic_0001>

<llo_original>
// kernel: tpu_custom_call.1
$region0: #{tpu_custom_call.1}
  #allocation0 [shape = 'u32[]', space=smem, size = 0x4, offset = 0x4, fixed_abs, tag = 'smem constant byte address 0x4 - core index']
  #allocation1 [shape = 'u32[144,128]{1,0:T(1,128)}', space=vmem, size = 0x12000, scoped, tag = 'internal scratch']
  %s0 = inlined_call_operand.hbm [shape: f32[8,896], index: 0, kind: input, shape index: {}]
  %s1 = inlined_call_operand.hbm [shape: f32[896,256], index: 1, kind: input, shape index: {}]
  %s2 = inlined_call_operand.vmem [shape: f32[1,256], index: 2, kind: input, shape index: {}]
  %s3 = inlined_call_operand.vmem [shape: f32[1,256], index: 3, kind: input, shape index: {}]
  %s4 = inlined_call_operand.hbm [shape: bf16[256,256], index: 4, kind: input, shape index: {}]
  %s5 = inlined_call_operand.vmem [shape: f32[1,256], index: 5, kind: input, shape index: {}]
  %s6 = inlined_call_operand.vmem [shape: f32[1,256], index: 6, kind: input, shape index: {}]
  %s7 = inlined_call_operand.hbm [shape: bf16[256,256], index: 7, kind: input, shape index: {}]
  %s8 = inlined_call_operand.vmem [shape: f32[1,256], index: 8, kind: input, shape index: {}]
  %s9 = inlined_call_operand.vmem [shape: f32[1,256], index: 9, kind: input, shape index: {}]
  %s10 = inlined_call_operand.hbm [shape: bf16[256,256], index: 10, kind: input, shape index: {}]
  %s11 = inlined_call_operand.vmem [shape: f32[1,256], index: 11, kind: input, shape index: {}]
  %s12 = inlined_call_operand.vmem [shape: f32[1,256], index: 12, kind: input, shape index: {}]
  %s13 = inlined_call_operand.hbm [shape: bf16[256,256], index: 13, kind: input, shape index: {}]
  %s14 = inlined_call_operand.vmem [shape: f32[1,256], index: 14, kind: input, shape index: {}]
  %s15 = inlined_call_operand.vmem [shape: f32[1,256], index: 15, kind: input, shape index: {}]
  %s16 = inlined_call_operand.hbm [shape: bf16[256,128], index: 16, kind: input, shape index: {}]
  %s17 = inlined_call_operand.vmem [shape: f32[1,128], index: 17, kind: input, shape index: {}]
  %s18 = inlined_call_operand.vmem [shape: f32[1,128], index: 18, kind: input, shape index: {}]
  %s19 = inlined_call_operand.hbm [shape: f32[8,128], index: 19, kind: output, shape index: {}]
  %s20 = sld [smem:[#allocation0]]
  $region114: #{tpu_custom_call.1} parent=0
    _
  %s22 = ssub.s32 1, %s20
  %s23 = scalar_select 0, %s22, %s20
  $region1: #{tpu_custom_call.1} parent=0
    #allocation2 [shape = 'u8[28672]{0}', space=vmem, size = 0x7000, scoped, tag = 'input window, operand 0, single buffered']
    #allocation3 [shape = 's32[1]{0}', space=sflag, size = 0x4, scoped, tag = 'scoped memory for tpu_custom_call.1']
    #allocation4 [shape = 's32[1]{0}', space=sflag, size = 0x4, scoped, tag = 'scoped memory for tpu_custom_call.1']
    #allocation5 [shape = 'u8[917504]{0}', space=vmem, size = 0xe0000, scoped, tag = 'input window, operand 1, single buffered']
    #allocation6 [shape = 's32[1]{0}', space=sflag, size = 0x4, scoped, tag = 'scoped memory for tpu_custom_call.1']
    #allocation7 [shape = 'u8[131072]{0}', space=vmem, size = 0x20000, scoped, tag = 'input window, operand 4, single buffered']
    #allocation8 [shape = 'u8[131072]{0}', space=vmem, size = 0x20000, scoped, tag = 'input window, operand 7, single buffered']
    #allocation9 [shape = 's32[1]{0}', space=sflag, size = 0x4, scoped, tag = 'scoped memory for tpu_custom_call.1']
    #allocation10 [shape = 'u8[131072]{0}', space=vmem, size = 0x20000, scoped, tag = 'input window, operand 10, single buffered']
    #allocation11 [shape = 'u8[131072]{0}', space=vmem, size = 0x20000, scoped, tag = 'input window, operand 13, single buffered']
    #allocation12 [shape = 's32[1]{0}', space=sflag, size = 0x4, scoped, tag = 'scoped memory for tpu_custom_call.1']
    #allocation13 [shape = 'u8[65536]{0}', space=vmem, size = 0x10000, scoped, tag = 'input window, operand 16, single buffered']
    #allocation14 [shape = 'u8[4096]{0}', space=vmem, size = 0x1000, scoped, tag = 'output window, operand 0, single buffered']
    %24 = vsyncpa [#allocation3], 0
    %25 = vsyncpa [#allocation6], 0
    %26 = vsyncpa [#allocation9], 0
    %27 = vsyncpa [#allocation12], 0
    %28 = vsyncpa [#allocation4], 0
    // Predicated region
    $region2: #{tpu_custom_call.1} parent=1 // pred_check
      _
    $region3: #{tpu_custom_call.1} parent=1 // pred_check_branch
      %30 = sbr.rel (0) target = $region5
    $region4: #{tpu_custom_call.1} parent=1 // pred_region
      %s32 = ssub.s32 896, 896
      %33 = vsyncadd [#allocation3], %s32
      %s35 = sshll.u32 [#allocation2], 4
      %s36 = int_to_ptr.vmem [resolvable:$true] %s35
      %38 = dma.hbm_to_vmem [thread:$0]  %s0, 896, %s36, [#allocation3]
    $region5: #{tpu_custom_call.1} parent=1 // pred_fallthru
      _
    // Predicated region
    $region6: #{tpu_custom_call.1} parent=1 // pred_check
      _
    $region7: #{tpu_custom_call.1} parent=1 // pred_check_branch
      %40 = sbr.rel (0) target = $region9
    $region8: #{tpu_custom_call.1} parent=1 // pred_region
      %s42 = ssub.s32 28672, 28672
      %43 = vsyncadd [#allocation6], %s42
      %s44 = sshll.u32 [#allocation5], 4
      %s45 = int_to_ptr.vmem [resolvable:$true] %s44
      %50 = dma.hbm_to_vmem [thread:$0]  %s1, 28672, %s45, [#allocation6], 256, 256, 16
    $region9: #{tpu_custom_call.1} parent=1 // pred_fallthru
      _
    // Predicated region
    $region10: #{tpu_custom_call.1} parent=1 // pred_check
      _
    $region11: #{tpu_custom_call.1} parent=1 // pred_check_branch
      %52 = sbr.rel (0) target = $region13
    $region12: #{tpu_custom_call.1} parent=1 // pred_region
      _
    $region13: #{tpu_custom_call.1} parent=1 // pred_fallthru
      _
    // Predicated region
    $region14: #{tpu_custom_call.1} parent=1 // pred_check
      _
    $region15: #{tpu_custom_call.1} parent=1 // pred_check_branch
      %54 = sbr.rel (0) target = $region17
    $region16: #{tpu_custom_call.1} parent=1 // pred_region
      _
    $region17: #{tpu_custom_call.1} parent=1 // pred_fallthru
      _
    // Predicated region
    $region18: #{tpu_custom_call.1} parent=1 // pred_check
      _
    $region19: #{tpu_custom_call.1} parent=1 // pred_check_branch
      %56 = sbr.rel (0) target = $region21
    $region20: #{tpu_custom_call.1} parent=1 // pred_region
      %s58 = ssub.s32 4096, 4096
      %59 = vsyncadd [#allocation6], %s58
      %s60 = sshll.u32 [#allocation7], 4
      %s61 = int_to_ptr.vmem [resolvable:$true] %s60
      %66 = dma.hbm_to_vmem [thread:$0]  %s4, 4096, %s61, [#allocation6], 128, 128, 8
    $region21: #{tpu_custom_call.1} parent=1 // pred_fallthru
      _
    // Predicated region
    $region22: #{tpu_custom_call.1} parent=1 // pred_check
      _
    $region23: #{tpu_custom_call.1} parent=1 // pred_check_branch
      %68 = sbr.rel (0) target = $region25
    $region24: #{tpu_custom_call.1} parent=1 // pred_region
      _
    $region25: #{tpu_custom_call.1} parent=1 // pred_fallthru
      _
    // Predicated region
    $region26: #{tpu_custom_call.1} parent=1 // pred_check
      _
    $region27: #{tpu_custom_call.1} parent=1 // pred_check_branch
      %70 = sbr.rel (0) target = $region29
    $region28: #{tpu_custom_call.1} parent=1 // pred_region
      _
    $region29: #{tpu_custom_call.1} parent=1 // pred_fallthru
      _
    // Predicated region
    $region30: #{tpu_custom_call.1} parent=1 // pred_check
      _
    $region31: #{tpu_custom_call.1} parent=1 // pred_check_branch
      %72 = sbr.rel (0) target = $region33
    $region32: #{tpu_custom_call.1} parent=1 // pred_region
      %s74 = ssub.s32 4096, 4096
      %75 = vsyncadd [#allocation9], %s74
      %s76 = sshll.u32 [#allocation8], 4
      %s77 = int_to_ptr.vmem [resolvable:$true] %s76
      %82 = dma.hbm_to_vmem [thread:$0]  %s7, 4096, %s77, [#allocation9], 128, 128, 8
    $region33: #{tpu_custom_call.1} parent=1 // pred_fallthru
      _
    // Predicated region
    $region34: #{tpu_custom_call.1} parent=1 // pred_check
      _
    $region35: #{tpu_custom_call.1} parent=1 // pred_check_branch
      %84 = sbr.rel (0) target = $region37
    $region36: #{tpu_custom_call.1} parent=1 // pred_region
      _
    $region37: #{tpu_custom_call.1} parent=1 // pred_fallthru
      _
    // Predicated region
    $region38: #{tpu_custom_call.1} parent=1 // pred_check
      _
    $region39: #{tpu_custom_call.1} parent=1 // pred_check_branch
      %86 = sbr.rel (0) target = $region41
    $region40: #{tpu_custom_call.1} parent=1 // pred_region
      _
    $region41: #{tpu_custom_call.1} parent=1 // pred_fallthru
      _
    // Predicated region
    $region42: #{tpu_custom_call.1} parent=1 // pred_check
      _
    $region43: #{tpu_custom_call.1} parent=1 // pred_check_branch
      %88 = sbr.rel (0) target = $region45
    $region44: #{tpu_custom_call.1} parent=1 // pred_region
      %s90 = ssub.s32 4096, 4096
      %91 = vsyncadd [#allocation9], %s90
      %s92 = sshll.u32 [#allocation10], 4
      %s93 = int_to_ptr.vmem [resolvable:$true] %s92
      %98 = dma.hbm_to_vmem [thread:$0]  %s10, 4096, %s93, [#allocation9], 128, 128, 8
    $region45: #{tpu_custom_call.1} parent=1 // pred_fallthru
      _
    // Predicated region
    $region46: #{tpu_custom_call.1} parent=1 // pred_check
      _
    $region47: #{tpu_custom_call.1} parent=1 // pred_check_branch
      %100 = sbr.rel (0) target = $region49
    $region48: #{tpu_custom_call.1} parent=1 // pred_region
      _
    $region49: #{tpu_custom_call.1} parent=1 // pred_fallthru
      _
    // Predicated region
    $region50: #{tpu_custom_call.1} parent=1 // pred_check
      _
    $region51: #{tpu_custom_call.1} parent=1 // pred_check_branch
      %102 = sbr.rel (0) target = $region53
    $region52: #{tpu_custom_call.1} parent=1 // pred_region
      _
    $region53: #{tpu_custom_call.1} parent=1 // pred_fallthru
      _
    // Predicated region
    $region54: #{tpu_custom_call.1} parent=1 // pred_check
      _
    $region55: #{tpu_custom_call.1} parent=1 // pred_check_branch
      %104 = sbr.rel (0) target = $region57
    $region56: #{tpu_custom_call.1} parent=1 // pred_region
      %s106 = ssub.s32 4096, 4096
      %107 = vsyncadd [#allocation12], %s106
      %s108 = sshll.u32 [#allocation11], 4
      %s109 = int_to_ptr.vmem [resolvable:$true] %s108
      %114 = dma.hbm_to_vmem [thread:$0]  %s13, 4096, %s109, [#allocation12], 128, 128, 8
    $region57: #{tpu_custom_call.1} parent=1 // pred_fallthru
      _
    // Predicated region
    $region58: #{tpu_custom_call.1} parent=1 // pred_check
      _
    $region59: #{tpu_custom_call.1} parent=1 // pred_check_branch
      %116 = sbr.rel (0) target = $region61
    $region60: #{tpu_custom_call.1} parent=1 // pred_region
      _
    $region61: #{tpu_custom_call.1} parent=1 // pred_fallthru
      _
    // Predicated region
    $region62: #{tpu_custom_call.1} parent=1 // pred_check
      _
    $region63: #{tpu_custom_call.1} parent=1 // pred_check_branch
      %118 = sbr.rel (0) target = $region65
    $region64: #{tpu_custom_call.1} parent=1 // pred_region
      _
    $region65: #{tpu_custom_call.1} parent=1 // pred_fallthru
      _
    // Predicated region
    $region66: #{tpu_custom_call.1} parent=1 // pred_check
      _
    $region67: #{tpu_custom_call.1} parent=1 // pred_check_branch
      %120 = sbr.rel (0) target = $region69
    $region68: #{tpu_custom_call.1} parent=1 // pred_region
      %s122 = ssub.s32 2048, 2048
      %123 = vsyncadd [#allocation12], %s122
      %s124 = sshll.u32 [#allocation13], 4
      %s125 = int_to_ptr.vmem [resolvable:$true] %s124
      %130 = dma.hbm_to_vmem [thread:$0]  %s16, 2048, %s125, [#allocation12], 64, 64, 4
    $region69: #{tpu_custom_call.1} parent=1 // pred_fallthru
      _
    // Predicated region
    $region70: #{tpu_custom_call.1} parent=1 // pred_check
      _
    $region71: #{tpu_custom_call.1} parent=1 // pred_check_branch
      %132 = sbr.rel (0) target = $region73
    $region72: #{tpu_custom_call.1} parent=1 // pred_region
      _
    $region73: #{tpu_custom_call.1} parent=1 // pred_fallthru
      _
    // Predicated region
    $region74: #{tpu_custom_call.1} parent=1 // pred_check
      _
    $region75: #{tpu_custom_call.1} parent=1 // pred_check_branch
      %134 = sbr.rel (0) target = $region77
    $region76: #{tpu_custom_call.1} parent=1 // pred_region
      _
    $region77: #{tpu_custom_call.1} parent=1 // pred_fallthru
      _
    // Predicated region
    $region78: #{tpu_custom_call.1} parent=1 // pred_check
      _
    $region79: #{tpu_custom_call.1} parent=1 // pred_check_branch
      %136 = sbr.rel (0) target = $region81
    $region80: #{tpu_custom_call.1} parent=1 // pred_region
      %137 = dma.done [#allocation3], 896
    $region81: #{tpu_custom_call.1} parent=1 // pred_fallthru
      _
    // Predicated region
    $region82: #{tpu_custom_call.1} parent=1 // pred_check
      _
    $region83: #{tpu_custom_call.1} parent=1 // pred_check_branch
      %139 = sbr.rel (0) target = $region85
    $region84: #{tpu_custom_call.1} parent=1 // pred_region
      %140 = dma.done [#allocation6], 28672
    $region85: #{tpu_custom_call.1} parent=1 // pred_fallthru
      _
    // Predicated region
    $region86: #{tpu_custom_call.1} parent=1 // pred_check
      _
    $region87: #{tpu_custom_call.1} parent=1 // pred_check_branch
      %142 = sbr.rel (0) target = $region89
    $region88: #{tpu_custom_call.1} parent=1 // pred_region
      %143 = dma.done [#allocation6], 4096
    $region89: #{tpu_custom_call.1} parent=1 // pred_fallthru
      _
    // Predicated region
    $region90: #{tpu_custom_call.1} parent=1 // pred_check
      _
    $region91: #{tpu_custom_call.1} parent=1 // pred_check_branch
      %145 = sbr.rel (0) target = $region93
    $region92: #{tpu_custom_call.1} parent=1 // pred_region
      %146 = dma.done [#allocation9], 4096
    $region93: #{tpu_custom_call.1} parent=1 // pred_fallthru
      _
    // Predicated region
    $region94: #{tpu_custom_call.1} parent=1 // pred_check
      _
    $region95: #{tpu_custom_call.1} parent=1 // pred_check_branch
      %148 = sbr.rel (0) target = $region97
    $region96: #{tpu_custom_call.1} parent=1 // pred_region
      %149 = dma.done [#allocation9], 4096
    $region97: #{tpu_custom_call.1} parent=1 // pred_fallthru
      _
    // Predicated region
    $region98: #{tpu_custom_call.1} parent=1 // pred_check
      _
    $region99: #{tpu_custom_call.1} parent=1 // pred_check_branch
      %151 = sbr.rel (0) target = $region101
    $region100: #{tpu_custom_call.1} parent=1 // pred_region
      %152 = dma.done [#allocation12], 4096
    $region101: #{tpu_custom_call.1} parent=1 // pred_fallthru
      _
    // Predicated region
    $region102: #{tpu_custom_call.1} parent=1 // pred_check
      _
    $region103: #{tpu_custom_call.1} parent=1 // pred_check_branch
      %154 = sbr.rel (0) target = $region105
    $region104: #{tpu_custom_call.1} parent=1 // pred_region
      %155 = dma.done [#allocation12], 2048
    $region105: #{tpu_custom_call.1} parent=1 // pred_fallthru
      _
    %v157 = vld [vmem:[#allocation2] sm:$0xff]
    %v158 = vld [vmem:[#allocation2 + $0x8] sm:$0xff]
    %v159 = vld [vmem:[#allocation2 + $0x10] sm:$0xff]
    %v160 = vld [vmem:[#allocation2 + $0x18] sm:$0xff]
    %v161 = vld [vmem:[#allocation2 + $0x20] sm:$0xff]
    %v162 = vld [vmem:[#allocation2 + $0x28] sm:$0xff]
    %v163 = vld [vmem:[#allocation2 + $0x30] sm:$0xff]
    %v164 = vld [vmem:[#allocation5] sm:$0xff]
    %v165 = vld [vmem:[#allocation5 + $0x8] sm:$0xff]
    %v166 = vld [vmem:[#allocation5 + $0x10] sm:$0xff]
    %v167 = vld [vmem:[#allocation5 + $0x18] sm:$0xff]
    %v168 = vld [vmem:[#allocation5 + $0x20] sm:$0xff]
    %v169 = vld [vmem:[#allocation5 + $0x28] sm:$0xff]
    %v170 = vld [vmem:[#allocation5 + $0x30] sm:$0xff]
    %v171 = vld [vmem:[#allocation5 + $0x38] sm:$0xff]
    %v172 = vld [vmem:[#allocation5 + $0x40] sm:$0xff]
    %v173 = vld [vmem:[#allocation5 + $0x48] sm:$0xff]
    %v174 = vld [vmem:[#allocation5 + $0x50] sm:$0xff]
    %v175 = vld [vmem:[#allocation5 + $0x58] sm:$0xff]
    %v176 = vld [vmem:[#allocation5 + $0x60] sm:$0xff]
    %v177 = vld [vmem:[#allocation5 + $0x68] sm:$0xff]
    %v178 = vld [vmem:[#allocation5 + $0x70] sm:$0xff]
    %v179 = vld [vmem:[#allocation5 + $0x78] sm:$0xff]
    %v180 = vld [vmem:[#allocation5 + $0x80] sm:$0xff]
    %v181 = vld [vmem:[#allocation5 + $0x88] sm:$0xff]
    %v182 = vld [vmem:[#allocation5 + $0x90] sm:$0xff]
    %v183 = vld [vmem:[#allocation5 + $0x98] sm:$0xff]
    %v184 = vld [vmem:[#allocation5 + $0xa0] sm:$0xff]
    %v185 = vld [vmem:[#allocation5 + $0xa8] sm:$0xff]
    %v186 = vld [vmem:[#allocation5 + $0xb0] sm:$0xff]
    %v187 = vld [vmem:[#allocation5 + $0xb8] sm:$0xff]
    %v188 = vld [vmem:[#allocation5 + $0xc0] sm:$0xff]
    %v189 = vld [vmem:[#allocation5 + $0xc8] sm:$0xff]
    %v190 = vld [vmem:[#allocation5 + $0xd0] sm:$0xff]
    %v191 = vld [vmem:[#allocation5 + $0xd8] sm:$0xff]
    %v192 = vld [vmem:[#allocation5 + $0xe0] sm:$0xff]
    %v193 = vld [vmem:[#allocation5 + $0xe8] sm:$0xff]
    %v194 = vld [vmem:[#allocation5 + $0xf0] sm:$0xff]
    %v195 = vld [vmem:[#allocation5 + $0xf8] sm:$0xff]
    %v196 = vld [vmem:[#allocation5 + $0x100] sm:$0xff]
    %v197 = vld [vmem:[#allocation5 + $0x108] sm:$0xff]
    %v198 = vld [vmem:[#allocation5 + $0x110] sm:$0xff]
    %v199 = vld [vmem:[#allocation5 + $0x118] sm:$0xff]
    %v200 = vld [vmem:[#allocation5 + $0x120] sm:$0xff]
    %v201 = vld [vmem:[#allocation5 + $0x128] sm:$0xff]
    %v202 = vld [vmem:[#allocation5 + $0x130] sm:$0xff]
    %v203 = vld [vmem:[#allocation5 + $0x138] sm:$0xff]
    %v204 = vld [vmem:[#allocation5 + $0x140] sm:$0xff]
    %v205 = vld [vmem:[#allocation5 + $0x148] sm:$0xff]
    %v206 = vld [vmem:[#allocation5 + $0x150] sm:$0xff]
    %v207 = vld [vmem:[#allocation5 + $0x158] sm:$0xff]
    %v208 = vld [vmem:[#allocation5 + $0x160] sm:$0xff]
    %v209 = vld [vmem:[#allocation5 + $0x168] sm:$0xff]
    %v210 = vld [vmem:[#allocation5 + $0x170] sm:$0xff]
    %v211 = vld [vmem:[#allocation5 + $0x178] sm:$0xff]
    %v212 = vld [vmem:[#allocation5 + $0x180] sm:$0xff]
    %v213 = vld [vmem:[#allocation5 + $0x188] sm:$0xff]
    %v214 = vld [vmem:[#allocation5 + $0x190] sm:$0xff]
    %v215 = vld [vmem:[#allocation5 + $0x198] sm:$0xff]
    %v216 = vld [vmem:[#allocation5 + $0x1a0] sm:$0xff]
    %v217 = vld [vmem:[#allocation5 + $0x1a8] sm:$0xff]
    %v218 = vld [vmem:[#allocation5 + $0x1b0] sm:$0xff]
    %v219 = vld [vmem:[#allocation5 + $0x1b8] sm:$0xff]
    %v220 = vld [vmem:[#allocation5 + $0x1c0] sm:$0xff]
    %v221 = vld [vmem:[#allocation5 + $0x1c8] sm:$0xff]
    %v222 = vld [vmem:[#allocation5 + $0x1d0] sm:$0xff]
    %v223 = vld [vmem:[#allocation5 + $0x1d8] sm:$0xff]
    %v224 = vld [vmem:[#allocation5 + $0x1e0] sm:$0xff]
    %v225 = vld [vmem:[#allocation5 + $0x1e8] sm:$0xff]
    %v226 = vld [vmem:[#allocation5 + $0x1f0] sm:$0xff]
    %v227 = vld [vmem:[#allocation5 + $0x1f8] sm:$0xff]
    %v228 = vld [vmem:[#allocation5 + $0x200] sm:$0xff]
    %v229 = vld [vmem:[#allocation5 + $0x208] sm:$0xff]
    %v230 = vld [vmem:[#allocation5 + $0x210] sm:$0xff]
    %v231 = vld [vmem:[#allocation5 + $0x218] sm:$0xff]
    %v232 = vld [vmem:[#allocation5 + $0x220] sm:$0xff]
    %v233 = vld [vmem:[#allocation5 + $0x228] sm:$0xff]
    %v234 = vld [vmem:[#allocation5 + $0x230] sm:$0xff]
    %v235 = vld [vmem:[#allocation5 + $0x238] sm:$0xff]
    %v236 = vld [vmem:[#allocation5 + $0x240] sm:$0xff]
    %v237 = vld [vmem:[#allocation5 + $0x248] sm:$0xff]
    %v238 = vld [vmem:[#allocation5 + $0x250] sm:$0xff]
    %v239 = vld [vmem:[#allocation5 + $0x258] sm:$0xff]
    %v240 = vld [vmem:[#allocation5 + $0x260] sm:$0xff]
    %v241 = vld [vmem:[#allocation5 + $0x268] sm:$0xff]
    %v242 = vld [vmem:[#allocation5 + $0x270] sm:$0xff]
    %v243 = vld [vmem:[#allocation5 + $0x278] sm:$0xff]
    %v244 = vld [vmem:[#allocation5 + $0x280] sm:$0xff]
    %v245 = vld [vmem:[#allocation5 + $0x288] sm:$0xff]
    %v246 = vld [vmem:[#allocation5 + $0x290] sm:$0xff]
    %v247 = vld [vmem:[#allocation5 + $0x298] sm:$0xff]
    %v248 = vld [vmem:[#allocation5 + $0x2a0] sm:$0xff]
    %v249 = vld [vmem:[#allocation5 + $0x2a8] sm:$0xff]
    %v250 = vld [vmem:[#allocation5 + $0x2b0] sm:$0xff]
    %v251 = vld [vmem:[#allocation5 + $0x2b8] sm:$0xff]
    %v252 = vld [vmem:[#allocation5 + $0x2c0] sm:$0xff]
    %v253 = vld [vmem:[#allocation5 + $0x2c8] sm:$0xff]
    %v254 = vld [vmem:[#allocation5 + $0x2d0] sm:$0xff]
    %v255 = vld [vmem:[#allocation5 + $0x2d8] sm:$0xff]
    %v256 = vld [vmem:[#allocation5 + $0x2e0] sm:$0xff]
    %v257 = vld [vmem:[#allocation5 + $0x2e8] sm:$0xff]
    %v258 = vld [vmem:[#allocation5 + $0x2f0] sm:$0xff]
    %v259 = vld [vmem:[#allocation5 + $0x2f8] sm:$0xff]
    %v260 = vld [vmem:[#allocation5 + $0x300] sm:$0xff]
    %v261 = vld [vmem:[#allocation5 + $0x308] sm:$0xff]
    %v262 = vld [vmem:[#allocation5 + $0x310] sm:$0xff]
    %v263 = vld [vmem:[#allocation5 + $0x318] sm:$0xff]
    %v264 = vld [vmem:[#allocation5 + $0x320] sm:$0xff]
    %v265 = vld [vmem:[#allocation5 + $0x328] sm:$0xff]
    %v266 = vld [vmem:[#allocation5 + $0x330] sm:$0xff]
    %v267 = vld [vmem:[#allocation5 + $0x338] sm:$0xff]
    %v268 = vld [vmem:[#allocation5 + $0x340] sm:$0xff]
    %v269 = vld [vmem:[#allocation5 + $0x348] sm:$0xff]
    %v270 = vld [vmem:[#allocation5 + $0x350] sm:$0xff]
    %v271 = vld [vmem:[#allocation5 + $0x358] sm:$0xff]
    %v272 = vld [vmem:[#allocation5 + $0x360] sm:$0xff]
    %v273 = vld [vmem:[#allocation5 + $0x368] sm:$0xff]
    %v274 = vld [vmem:[#allocation5 + $0x370] sm:$0xff]
    %v275 = vld [vmem:[#allocation5 + $0x378] sm:$0xff]
    %v276 = vld [vmem:[#allocation5 + $0x380] sm:$0xff]
    %v277 = vld [vmem:[#allocation5 + $0x388] sm:$0xff]
    %v278 = vld [vmem:[#allocation5 + $0x390] sm:$0xff]
    %v279 = vld [vmem:[#allocation5 + $0x398] sm:$0xff]
    %v280 = vld [vmem:[#allocation5 + $0x3a0] sm:$0xff]
    %v281 = vld [vmem:[#allocation5 + $0x3a8] sm:$0xff]
    %v282 = vld [vmem:[#allocation5 + $0x3b0] sm:$0xff]
    %v283 = vld [vmem:[#allocation5 + $0x3b8] sm:$0xff]
    %v284 = vld [vmem:[#allocation5 + $0x3c0] sm:$0xff]
    %v285 = vld [vmem:[#allocation5 + $0x3c8] sm:$0xff]
    %v286 = vld [vmem:[#allocation5 + $0x3d0] sm:$0xff]
    %v287 = vld [vmem:[#allocation5 + $0x3d8] sm:$0xff]
    %v288 = vld [vmem:[#allocation5 + $0x3e0] sm:$0xff]
    %v289 = vld [vmem:[#allocation5 + $0x3e8] sm:$0xff]
    %v290 = vld [vmem:[#allocation5 + $0x3f0] sm:$0xff]
    %v291 = vld [vmem:[#allocation5 + $0x3f8] sm:$0xff]
    %v292 = vld [vmem:[#allocation5 + $0x400] sm:$0xff]
    %v293 = vld [vmem:[#allocation5 + $0x408] sm:$0xff]
    %v294 = vld [vmem:[#allocation5 + $0x410] sm:$0xff]
    %v295 = vld [vmem:[#allocation5 + $0x418] sm:$0xff]
    %v296 = vld [vmem:[#allocation5 + $0x420] sm:$0xff]
    %v297 = vld [vmem:[#allocation5 + $0x428] sm:$0xff]
    %v298 = vld [vmem:[#allocation5 + $0x430] sm:$0xff]
    %v299 = vld [vmem:[#allocation5 + $0x438] sm:$0xff]
    %v300 = vld [vmem:[#allocation5 + $0x440] sm:$0xff]
    %v301 = vld [vmem:[#allocation5 + $0x448] sm:$0xff]
    %v302 = vld [vmem:[#allocation5 + $0x450] sm:$0xff]
    %v303 = vld [vmem:[#allocation5 + $0x458] sm:$0xff]
    %v304 = vld [vmem:[#allocation5 + $0x460] sm:$0xff]
    %v305 = vld [vmem:[#allocation5 + $0x468] sm:$0xff]
    %v306 = vld [vmem:[#allocation5 + $0x470] sm:$0xff]
    %v307 = vld [vmem:[#allocation5 + $0x478] sm:$0xff]
    %v308 = vld [vmem:[#allocation5 + $0x480] sm:$0xff]
    %v309 = vld [vmem:[#allocation5 + $0x488] sm:$0xff]
    %v310 = vld [vmem:[#allocation5 + $0x490] sm:$0xff]
    %v311 = vld [vmem:[#allocation5 + $0x498] sm:$0xff]
    %v312 = vld [vmem:[#allocation5 + $0x4a0] sm:$0xff]
    %v313 = vld [vmem:[#allocation5 + $0x4a8] sm:$0xff]
    %v314 = vld [vmem:[#allocation5 + $0x4b0] sm:$0xff]
    %v315 = vld [vmem:[#allocation5 + $0x4b8] sm:$0xff]
    %v316 = vld [vmem:[#allocation5 + $0x4c0] sm:$0xff]
    %v317 = vld [vmem:[#allocation5 + $0x4c8] sm:$0xff]
    %v318 = vld [vmem:[#allocation5 + $0x4d0] sm:$0xff]
    %v319 = vld [vmem:[#allocation5 + $0x4d8] sm:$0xff]
    %v320 = vld [vmem:[#allocation5 + $0x4e0] sm:$0xff]
    %v321 = vld [vmem:[#allocation5 + $0x4e8] sm:$0xff]
    %v322 = vld [vmem:[#allocation5 + $0x4f0] sm:$0xff]
    %v323 = vld [vmem:[#allocation5 + $0x4f8] sm:$0xff]
    %v324 = vld [vmem:[#allocation5 + $0x500] sm:$0xff]
    %v325 = vld [vmem:[#allocation5 + $0x508] sm:$0xff]
    %v326 = vld [vmem:[#allocation5 + $0x510] sm:$0xff]
    %v327 = vld [vmem:[#allocation5 + $0x518] sm:$0xff]
    %v328 = vld [vmem:[#allocation5 + $0x520] sm:$0xff]
    %v329 = vld [vmem:[#allocation5 + $0x528] sm:$0xff]
    %v330 = vld [vmem:[#allocation5 + $0x530] sm:$0xff]
    %v331 = vld [vmem:[#allocation5 + $0x538] sm:$0xff]
    %v332 = vld [vmem:[#allocation5 + $0x540] sm:$0xff]
    %v333 = vld [vmem:[#allocation5 + $0x548] sm:$0xff]
    %v334 = vld [vmem:[#allocation5 + $0x550] sm:$0xff]
    %v335 = vld [vmem:[#allocation5 + $0x558] sm:$0xff]
    %v336 = vld [vmem:[#allocation5 + $0x560] sm:$0xff]
    %v337 = vld [vmem:[#allocation5 + $0x568] sm:$0xff]
    %v338 = vld [vmem:[#allocation5 + $0x570] sm:$0xff]
    %v339 = vld [vmem:[#allocation5 + $0x578] sm:$0xff]
    %v340 = vld [vmem:[#allocation5 + $0x580] sm:$0xff]
    %v341 = vld [vmem:[#allocation5 + $0x588] sm:$0xff]
    %v342 = vld [vmem:[#allocation5 + $0x590] sm:$0xff]
    %v343 = vld [vmem:[#allocation5 + $0x598] sm:$0xff]
    %v344 = vld [vmem:[#allocation5 + $0x5a0] sm:$0xff]
    %v345 = vld [vmem:[#allocation5 + $0x5a8] sm:$0xff]
    %v346 = vld [vmem:[#allocation5 + $0x5b0] sm:$0xff]
    %v347 = vld [vmem:[#allocation5 + $0x5b8] sm:$0xff]
    %v348 = vld [vmem:[#allocation5 + $0x5c0] sm:$0xff]
    %v349 = vld [vmem:[#allocation5 + $0x5c8] sm:$0xff]
    %v350 = vld [vmem:[#allocation5 + $0x5d0] sm:$0xff]
    %v351 = vld [vmem:[#allocation5 + $0x5d8] sm:$0xff]
    %v352 = vld [vmem:[#allocation5 + $0x5e0] sm:$0xff]
    %v353 = vld [vmem:[#allocation5 + $0x5e8] sm:$0xff]
    %v354 = vld [vmem:[#allocation5 + $0x5f0] sm:$0xff]
    %v355 = vld [vmem:[#allocation5 + $0x5f8] sm:$0xff]
    %v356 = vld [vmem:[#allocation5 + $0x600] sm:$0xff]
    %v357 = vld [vmem:[#allocation5 + $0x608] sm:$0xff]
    %v358 = vld [vmem:[#allocation5 + $0x610] sm:$0xff]
    %v359 = vld [vmem:[#allocation5 + $0x618] sm:$0xff]
    %v360 = vld [vmem:[#allocation5 + $0x620] sm:$0xff]
    %v361 = vld [vmem:[#allocation5 + $0x628] sm:$0xff]
    %v362 = vld [vmem:[#allocation5 + $0x630] sm:$0xff]
    %v363 = vld [vmem:[#allocation5 + $0x638] sm:$0xff]
    %v364 = vld [vmem:[#allocation5 + $0x640] sm:$0xff]
    %v365 = vld [vmem:[#allocation5 + $0x648] sm:$0xff]
    %v366 = vld [vmem:[#allocation5 + $0x650] sm:$0xff]
    %v367 = vld [vmem:[#allocation5 + $0x658] sm:$0xff]
    %v368 = vld [vmem:[#allocation5 + $0x660] sm:$0xff]
    %v369 = vld [vmem:[#allocation5 + $0x668] sm:$0xff]
    %v370 = vld [vmem:[#allocation5 + $0x670] sm:$0xff]
    %v371 = vld [vmem:[#allocation5 + $0x678] sm:$0xff]
    %v372 = vld [vmem:[#allocation5 + $0x680] sm:$0xff]
    %v373 = vld [vmem:[#allocation5 + $0x688] sm:$0xff]
    %v374 = vld [vmem:[#allocation5 + $0x690] sm:$0xff]
    %v375 = vld [vmem:[#allocation5 + $0x698] sm:$0xff]
    %v376 = vld [vmem:[#allocation5 + $0x6a0] sm:$0xff]
    %v377 = vld [vmem:[#allocation5 + $0x6a8] sm:$0xff]
    %v378 = vld [vmem:[#allocation5 + $0x6b0] sm:$0xff]
    %v379 = vld [vmem:[#allocation5 + $0x6b8] sm:$0xff]
    %v380 = vld [vmem:[#allocation5 + $0x6c0] sm:$0xff]
    %v381 = vld [vmem:[#allocation5 + $0x6c8] sm:$0xff]
    %v382 = vld [vmem:[#allocation5 + $0x6d0] sm:$0xff]
    %v383 = vld [vmem:[#allocation5 + $0x6d8] sm:$0xff]
    %v384 = vld [vmem:[#allocation5 + $0x6e0] sm:$0xff]
    %v385 = vld [vmem:[#allocation5 + $0x6e8] sm:$0xff]
    %v386 = vld [vmem:[#allocation5 + $0x6f0] sm:$0xff]
    %v387 = vld [vmem:[#allocation5 + $0x6f8] sm:$0xff]
    %388 = vmatprep.subr.mxu0 %v165
    %389 = vmatpush1.msra.mxu0 %v164
    %390 = vmatprep.subr.mxu0 %v167
    %391 = vmatpush1.msra.mxu0 %v166
    %392 = vmatprep.subr.mxu0 %v169
    %393 = vmatpush1.msra.mxu0 %v168
    %394 = vmatprep.subr.mxu0 %v171
    %395 = vmatpush1.msra.mxu0 %v170
    %396 = vmatprep.subr.mxu0 %v173
    %397 = vmatpush1.msra.mxu0 %v172
    %398 = vmatprep.subr.mxu0 %v175
    %399 = vmatpush1.msra.mxu0 %v174
    %400 = vmatprep.subr.mxu0 %v177
    %401 = vmatpush1.msra.mxu0 %v176
    %402 = vmatprep.subr.mxu0 %v179
    %403 = vmatpush1.msra.mxu0 %v178
    %404 = vmatprep.subr.mxu0 %v181
    %405 = vmatpush1.msra.mxu0 %v180
    %406 = vmatprep.subr.mxu0 %v183
    %407 = vmatpush1.msra.mxu0 %v182
    %408 = vmatprep.subr.mxu0 %v185
    %409 = vmatpush1.msra.mxu0 %v184
    %410 = vmatprep.subr.mxu0 %v187
    %411 = vmatpush1.msra.mxu0 %v186
    %412 = vmatprep.subr.mxu0 %v189
    %413 = vmatpush1.msra.mxu0 %v188
    %414 = vmatprep.subr.mxu0 %v191
    %415 = vmatpush1.msra.mxu0 %v190
    %416 = vmatprep.subr.mxu0 %v193
    %417 = vmatpush1.msra.mxu0 %v192
    %418 = vmatprep.subr.mxu0 %v195
    %419 = vmatpush1.msra.mxu0 %v194
    %420 = vmatprep.subr.mxu0 %v197
    %421 = vmatpush1.msra.mxu0 %v196
    %422 = vmatprep.subr.mxu0 %v199
    %423 = vmatpush1.msra.mxu0 %v198
    %424 = vmatprep.subr.mxu0 %v201
    %425 = vmatpush1.msra.mxu0 %v200
    %426 = vmatprep.subr.mxu0 %v203
    %427 = vmatpush1.msra.mxu0 %v202
    %428 = vmatprep.subr.mxu0 %v205
    %429 = vmatpush1.msra.mxu0 %v204
    %430 = vmatprep.subr.mxu0 %v207
    %431 = vmatpush1.msra.mxu0 %v206
    %432 = vmatprep.subr.mxu0 %v209
    %433 = vmatpush1.msra.mxu0 %v208
    %434 = vmatprep.subr.mxu0 %v211
    %435 = vmatpush1.msra.mxu0 %v210
    %436 = vmatprep.subr.mxu0 %v213
    %437 = vmatpush1.msra.mxu0 %v212
    %438 = vmatprep.subr.mxu0 %v215
    %439 = vmatpush1.msra.mxu0 %v214
    %440 = vmatprep.subr.mxu0 %v217
    %441 = vmatpush1.msra.mxu0 %v216
    %442 = vmatprep.subr.mxu0 %v219
    %443 = vmatpush1.msra.mxu0 %v218
    %444 = vmatprep.subr.mxu0 %v221
    %445 = vmatpush1.msra.mxu0 %v220
    %446 = vmatprep.subr.mxu0 %v223
    %447 = vmatpush1.msra.mxu0 %v222
    %448 = vmatprep.subr.mxu0 %v225
    %449 = vmatpush1.msra.mxu0 %v224
    %450 = vmatprep.subr.mxu0 %v227
    %451 = vmatpush1.msra.mxu0 %v226
    %452 = vmatprep.mubr.f32.mxu0 %v158
    %453 = vmatmul.mubr.f32.gmra.mrb[0].mxu0 %v157
    %v454 = vpop.f32.mrb[0].mxu0
    %v455 = vadd.f32 0.0, %v454
    %v456 = vpop.f32.mrb[0].mxu0
    %v457 = vadd.f32 0.0, %v456
    %458 = vdwg.mxu0
    %459 = vmatprep.subr.mxu0 %v229
    %460 = vmatpush1.msra.mxu0 %v228
    %461 = vmatprep.subr.mxu0 %v231
    %462 = vmatpush1.msra.mxu0 %v230
    %463 = vmatprep.subr.mxu0 %v233
    %464 = vmatpush1.msra.mxu0 %v232
    %465 = vmatprep.subr.mxu0 %v235
    %466 = vmatpush1.msra.mxu0 %v234
    %467 = vmatprep.subr.mxu0 %v237
    %468 = vmatpush1.msra.mxu0 %v236
    %469 = vmatprep.subr.mxu0 %v239
    %470 = vmatpush1.msra.mxu0 %v238
    %471 = vmatprep.subr.mxu0 %v241
    %472 = vmatpush1.msra.mxu0 %v240
    %473 = vmatprep.subr.mxu0 %v243
    %474 = vmatpush1.msra.mxu0 %v242
    %475 = vmatprep.subr.mxu0 %v245
    %476 = vmatpush1.msra.mxu0 %v244
    %477 = vmatprep.subr.mxu0 %v247
    %478 = vmatpush1.msra.mxu0 %v246
    %479 = vmatprep.subr.mxu0 %v249
    %480 = vmatpush1.msra.mxu0 %v248
    %481 = vmatprep.subr.mxu0 %v251
    %482 = vmatpush1.msra.mxu0 %v250
    %483 = vmatprep.subr.mxu0 %v253
    %484 = vmatpush1.msra.mxu0 %v252
    %485 = vmatprep.subr.mxu0 %v255
    %486 = vmatpush1.msra.mxu0 %v254
    %487 = vmatprep.subr.mxu0 %v257
    %488 = vmatpush1.msra.mxu0 %v256
    %489 = vmatprep.subr.mxu0 %v259
    %490 = vmatpush1.msra.mxu0 %v258
    %491 = vmatprep.subr.mxu0 %v261
    %492 = vmatpush1.msra.mxu0 %v260
    %493 = vmatprep.subr.mxu0 %v263
    %494 = vmatpush1.msra.mxu0 %v262
    %495 = vmatprep.subr.mxu0 %v265
    %496 = vmatpush1.msra.mxu0 %v264
    %497 = vmatprep.subr.mxu0 %v267
    %498 = vmatpush1.msra.mxu0 %v266
    %499 = vmatprep.subr.mxu0 %v269
    %500 = vmatpush1.msra.mxu0 %v268
    %501 = vmatprep.subr.mxu0 %v271
    %502 = vmatpush1.msra.mxu0 %v270
    %503 = vmatprep.subr.mxu0 %v273
    %504 = vmatpush1.msra.mxu0 %v272
    %505 = vmatprep.subr.mxu0 %v275
    %506 = vmatpush1.msra.mxu0 %v274
    %507 = vmatprep.subr.mxu0 %v277
    %508 = vmatpush1.msra.mxu0 %v276
    %509 = vmatprep.subr.mxu0 %v279
    %510 = vmatpush1.msra.mxu0 %v278
    %511 = vmatprep.subr.mxu0 %v281
    %512 = vmatpush1.msra.mxu0 %v280
    %513 = vmatprep.subr.mxu0 %v283
    %514 = vmatpush1.msra.mxu0 %v282
    %515 = vmatprep.subr.mxu0 %v285
    %516 = vmatpush1.msra.mxu0 %v284
    %517 = vmatprep.subr.mxu0 %v287
    %518 = vmatpush1.msra.mxu0 %v286
    %519 = vmatprep.subr.mxu0 %v289
    %520 = vmatpush1.msra.mxu0 %v288
    %521 = vmatprep.subr.mxu0 %v291
    %522 = vmatpush1.msra.mxu0 %v290
    %523 = vmatprep.mubr.f32.mxu0 %v160
    %524 = vmatmul.mubr.f32.gmra.mrb[0].mxu0 %v159
    %v525 = vpop.f32.mrb[0].mxu0
    %v526 = vadd.f32 %v455, %v525
    %v527 = vpop.f32.mrb[0].mxu0
    %v528 = vadd.f32 %v457, %v527
    %529 = vdwg.mxu0
    %530 = vmatprep.subr.mxu0 %v293
    %531 = vmatpush1.msra.mxu0 %v292
    %532 = vmatprep.subr.mxu0 %v295
    %533 = vmatpush1.msra.mxu0 %v294
    %534 = vmatprep.subr.mxu0 %v297
    %535 = vmatpush1.msra.mxu0 %v296
    %536 = vmatprep.subr.mxu0 %v299
    %537 = vmatpush1.msra.mxu0 %v298
    %538 = vmatprep.subr.mxu0 %v301
    %539 = vmatpush1.msra.mxu0 %v300
    %540 = vmatprep.subr.mxu0 %v303
    %541 = vmatpush1.msra.mxu0 %v302
    %542 = vmatprep.subr.mxu0 %v305
    %543 = vmatpush1.msra.mxu0 %v304
    %544 = vmatprep.subr.mxu0 %v307
    %545 = vmatpush1.msra.mxu0 %v306
    %546 = vmatprep.subr.mxu0 %v309
    %547 = vmatpush1.msra.mxu0 %v308
    %548 = vmatprep.subr.mxu0 %v311
    %549 = vmatpush1.msra.mxu0 %v310
    %550 = vmatprep.subr.mxu0 %v313
    %551 = vmatpush1.msra.mxu0 %v312
    %552 = vmatprep.subr.mxu0 %v315
    %553 = vmatpush1.msra.mxu0 %v314
    %554 = vmatprep.subr.mxu0 %v317
    %555 = vmatpush1.msra.mxu0 %v316
    %556 = vmatprep.subr.mxu0 %v319
    %557 = vmatpush1.msra.mxu0 %v318
    %558 = vmatprep.subr.mxu0 %v321
    %559 = vmatpush1.msra.mxu0 %v320
    %560 = vmatprep.subr.mxu0 %v323
    %561 = vmatpush1.msra.mxu0 %v322
    %562 = vmatprep.subr.mxu0 %v325
    %563 = vmatpush1.msra.mxu0 %v324
    %564 = vmatprep.subr.mxu0 %v327
    %565 = vmatpush1.msra.mxu0 %v326
    %566 = vmatprep.subr.mxu0 %v329
    %567 = vmatpush1.msra.mxu0 %v328
    %568 = vmatprep.subr.mxu0 %v331
    %569 = vmatpush1.msra.mxu0 %v330
    %570 = vmatprep.subr.mxu0 %v333
    %571 = vmatpush1.msra.mxu0 %v332
    %572 = vmatprep.subr.mxu0 %v335
    %573 = vmatpush1.msra.mxu0 %v334
    %574 = vmatprep.subr.mxu0 %v337
    %575 = vmatpush1.msra.mxu0 %v336
    %576 = vmatprep.subr.mxu0 %v339
    %577 = vmatpush1.msra.mxu0 %v338
    %578 = vmatprep.subr.mxu0 %v341
    %579 = vmatpush1.msra.mxu0 %v340
    %580 = vmatprep.subr.mxu0 %v343
    %581 = vmatpush1.msra.mxu0 %v342
    %582 = vmatprep.subr.mxu0 %v345
    %583 = vmatpush1.msra.mxu0 %v344
    %584 = vmatprep.subr.mxu0 %v347
    %585 = vmatpush1.msra.mxu0 %v346
    %586 = vmatprep.subr.mxu0 %v349
    %587 = vmatpush1.msra.mxu0 %v348
    %588 = vmatprep.subr.mxu0 %v351
    %589 = vmatpush1.msra.mxu0 %v350
    %590 = vmatprep.subr.mxu0 %v353
    %591 = vmatpush1.msra.mxu0 %v352
    %592 = vmatprep.subr.mxu0 %v355
    %593 = vmatpush1.msra.mxu0 %v354
    %594 = vmatprep.mubr.f32.mxu0 %v162
    %595 = vmatmul.mubr.f32.gmra.mrb[0].mxu0 %v161
    %v596 = vpop.f32.mrb[0].mxu0
    %v597 = vadd.f32 %v526, %v596
    %v598 = vpop.f32.mrb[0].mxu0
    %v599 = vadd.f32 %v528, %v598
    %600 = vdwg.mxu0
    %601 = vmatprep.subr.mxu0 %v357
    %602 = vmatpush1.msra.mxu0 %v356
    %603 = vmatprep.subr.mxu0 %v359
    %604 = vmatpush1.msra.mxu0 %v358
    %605 = vmatprep.subr.mxu0 %v361
    %606 = vmatpush1.msra.mxu0 %v360
    %607 = vmatprep.subr.mxu0 %v363
    %608 = vmatpush1.msra.mxu0 %v362
    %609 = vmatprep.subr.mxu0 %v365
    %610 = vmatpush1.msra.mxu0 %v364
    %611 = vmatprep.subr.mxu0 %v367
    %612 = vmatpush1.msra.mxu0 %v366
    %613 = vmatprep.subr.mxu0 %v369
    %614 = vmatpush1.msra.mxu0 %v368
    %615 = vmatprep.subr.mxu0 %v371
    %616 = vmatpush1.msra.mxu0 %v370
    %617 = vmatprep.subr.mxu0 %v373
    %618 = vmatpush1.msra.mxu0 %v372
    %619 = vmatprep.subr.mxu0 %v375
    %620 = vmatpush1.msra.mxu0 %v374
    %621 = vmatprep.subr.mxu0 %v377
    %622 = vmatpush1.msra.mxu0 %v376
    %623 = vmatprep.subr.mxu0 %v379
    %624 = vmatpush1.msra.mxu0 %v378
    %625 = vmatprep.subr.mxu0 %v381
    %626 = vmatpush1.msra.mxu0 %v380
    %627 = vmatprep.subr.mxu0 %v383
    %628 = vmatpush1.msra.mxu0 %v382
    %629 = vmatprep.subr.mxu0 %v385
    %630 = vmatpush1.msra.mxu0 %v384
    %631 = vmatprep.subr.mxu0 %v387
    %632 = vmatpush1.msra.mxu0 %v386
    %633 = vmatprep.subr.mxu0 0.0
    %634 = vmatpush1.msra.mxu0 0.0
    %635 = vmatprep.subr.mxu0 0.0
    %636 = vmatpush1.msra.mxu0 0.0
    %637 = vmatprep.subr.mxu0 0.0
    %638 = vmatpush1.msra.mxu0 0.0
    %639 = vmatprep.subr.mxu0 0.0
    %640 = vmatpush1.msra.mxu0 0.0
    %641 = vmatprep.subr.mxu0 0.0
    %642 = vmatpush1.msra.mxu0 0.0
    %643 = vmatprep.subr.mxu0 0.0
    %644 = vmatpush1.msra.mxu0 0.0
    %645 = vmatprep.subr.mxu0 0.0
    %646 = vmatpush1.msra.mxu0 0.0
    %647 = vmatprep.subr.mxu0 0.0
    %648 = vmatpush1.msra.mxu0 0.0
    %649 = vmatprep.subr.mxu0 0.0
    %650 = vmatpush1.msra.mxu0 0.0
    %651 = vmatprep.subr.mxu0 0.0
    %652 = vmatpush1.msra.mxu0 0.0
    %653 = vmatprep.subr.mxu0 0.0
    %654 = vmatpush1.msra.mxu0 0.0
    %655 = vmatprep.subr.mxu0 0.0
    %656 = vmatpush1.msra.mxu0 0.0
    %657 = vmatprep.subr.mxu0 0.0
    %658 = vmatpush1.msra.mxu0 0.0
    %659 = vmatprep.subr.mxu0 0.0
    %660 = vmatpush1.msra.mxu0 0.0
    %661 = vmatprep.subr.mxu0 0.0
    %662 = vmatpush1.msra.mxu0 0.0
    %663 = vmatprep.subr.mxu0 0.0
    %664 = vmatpush1.msra.mxu0 0.0
    %665 = vmatprep.mubr.f32.mxu0 0.0
    %666 = vmatmul.mubr.f32.gmra.mrb[0].mxu0 %v163
    %v667 = vpop.f32.mrb[0].mxu0
    %v668 = vadd.f32 %v597, %v667
    %v669 = vpop.f32.mrb[0].mxu0
    %v670 = vadd.f32 %v599, %v669
    %671 = vdwg.mxu0
    %v672 = vld [vmem:[%s2] sm:$0x3]
    %v674 = vlaneseq
    %v675 = vshrl.u32 %v674, 7
    %v676 = vsub.s32 0, %v675
    %v677 = vrot.slane %v672, %v676
    %v678 = vlaneseq
    %v679 = vshrl.u32 %v678, 7
    %v680 = vsub.s32 1, %v679
    %v681 = vrot.slane %v672, %v680
    %v684 = vmul.f32 %v668, %v677
    %v685 = vmul.f32 %v670, %v681
    %v686 = vld [vmem:[%s3] sm:$0x3]
    %v688 = vlaneseq
    %v689 = vshrl.u32 %v688, 7
    %v690 = vsub.s32 0, %v689
    %v691 = vrot.slane %v686, %v690
    %v692 = vlaneseq
    %v693 = vshrl.u32 %v692, 7
    %v694 = vsub.s32 1, %v693
    %v695 = vrot.slane %v686, %v694
    %v698 = vadd.f32 %v684, %v691
    %v699 = vadd.f32 %v685, %v695
    %vm700 = vcmp.ge.f32.partialorder %v698, 0.0
    %vm701 = vcmp.ge.f32.partialorder %v699, 0.0
    %v702 = vsel %vm700, 1.0, -1.0
    %v703 = vsel %vm701, 1.0, -1.0
    %v704 = vpack.c.bf16 %v702, %v702
    %v705 = vpack.c.bf16 %v703, %v703
    %v706 = vld [vmem:[#allocation7] sm:$0xff]
    %v707 = vld [vmem:[#allocation7 + $0x8] sm:$0xff]
    %v708 = vld [vmem:[#allocation7 + $0x10] sm:$0xff]
    %v709 = vld [vmem:[#allocation7 + $0x18] sm:$0xff]
    %v710 = vld [vmem:[#allocation7 + $0x20] sm:$0xff]
    %v711 = vld [vmem:[#allocation7 + $0x28] sm:$0xff]
    %v712 = vld [vmem:[#allocation7 + $0x30] sm:$0xff]
    %v713 = vld [vmem:[#allocation7 + $0x38] sm:$0xff]
    %v714 = vld [vmem:[#allocation7 + $0x40] sm:$0xff]
    %v715 = vld [vmem:[#allocation7 + $0x48] sm:$0xff]
    %v716 = vld [vmem:[#allocation7 + $0x50] sm:$0xff]
    %v717 = vld [vmem:[#allocation7 + $0x58] sm:$0xff]
    %v718 = vld [vmem:[#allocation7 + $0x60] sm:$0xff]
    %v719 = vld [vmem:[#allocation7 + $0x68] sm:$0xff]
    %v720 = vld [vmem:[#allocation7 + $0x70] sm:$0xff]
    %v721 = vld [vmem:[#allocation7 + $0x78] sm:$0xff]
    %v722 = vld [vmem:[#allocation7 + $0x80] sm:$0xff]
    %v723 = vld [vmem:[#allocation7 + $0x88] sm:$0xff]
    %v724 = vld [vmem:[#allocation7 + $0x90] sm:$0xff]
    %v725 = vld [vmem:[#allocation7 + $0x98] sm:$0xff]
    %v726 = vld [vmem:[#allocation7 + $0xa0] sm:$0xff]
    %v727 = vld [vmem:[#allocation7 + $0xa8] sm:$0xff]
    %v728 = vld [vmem:[#allocation7 + $0xb0] sm:$0xff]
    %v729 = vld [vmem:[#allocation7 + $0xb8] sm:$0xff]
    %v730 = vld [vmem:[#allocation7 + $0xc0] sm:$0xff]
    %v731 = vld [vmem:[#allocation7 + $0xc8] sm:$0xff]
    %v732 = vld [vmem:[#allocation7 + $0xd0] sm:$0xff]
    %v733 = vld [vmem:[#allocation7 + $0xd8] sm:$0xff]
    %v734 = vld [vmem:[#allocation7 + $0xe0] sm:$0xff]
    %v735 = vld [vmem:[#allocation7 + $0xe8] sm:$0xff]
    %v736 = vld [vmem:[#allocation7 + $0xf0] sm:$0xff]
    %v737 = vld [vmem:[#allocation7 + $0xf8] sm:$0xff]
    %v770 = vunpack.c.l.b16 %v706
    %v771 = vunpack.c.h.b16 %v706
    %v772 = vunpack.c.l.b16 %v707
    %v773 = vunpack.c.h.b16 %v707
    %v774 = vunpack.c.l.b16 %v708
    %v775 = vunpack.c.h.b16 %v708
    %v776 = vunpack.c.l.b16 %v709
    %v777 = vunpack.c.h.b16 %v709
    %v778 = vunpack.c.l.b16 %v710
    %v779 = vunpack.c.h.b16 %v710
    %v780 = vunpack.c.l.b16 %v711
    %v781 = vunpack.c.h.b16 %v711
    %v782 = vunpack.c.l.b16 %v712
    %v783 = vunpack.c.h.b16 %v712
    %v784 = vunpack.c.l.b16 %v713
    %v785 = vunpack.c.h.b16 %v713
    %v786 = vunpack.c.l.b16 %v714
    %v787 = vunpack.c.h.b16 %v714
    %v788 = vunpack.c.l.b16 %v715
    %v789 = vunpack.c.h.b16 %v715
    %v790 = vunpack.c.l.b16 %v716
    %v791 = vunpack.c.h.b16 %v716
    %v792 = vunpack.c.l.b16 %v717
    %v793 = vunpack.c.h.b16 %v717
    %v794 = vunpack.c.l.b16 %v718
    %v795 = vunpack.c.h.b16 %v718
    %v796 = vunpack.c.l.b16 %v719
    %v797 = vunpack.c.h.b16 %v719
    %v798 = vunpack.c.l.b16 %v720
    %v799 = vunpack.c.h.b16 %v720
    %v800 = vunpack.c.l.b16 %v721
    %v801 = vunpack.c.h.b16 %v721
    %v802 = vunpack.c.l.b16 %v722
    %v803 = vunpack.c.h.b16 %v722
    %v804 = vunpack.c.l.b16 %v723
    %v805 = vunpack.c.h.b16 %v723
    %v806 = vunpack.c.l.b16 %v724
    %v807 = vunpack.c.h.b16 %v724
    %v808 = vunpack.c.l.b16 %v725
    %v809 = vunpack.c.h.b16 %v725
    %v810 = vunpack.c.l.b16 %v726
    %v811 = vunpack.c.h.b16 %v726
    %v812 = vunpack.c.l.b16 %v727
    %v813 = vunpack.c.h.b16 %v727
    %v814 = vunpack.c.l.b16 %v728
    %v815 = vunpack.c.h.b16 %v728
    %v816 = vunpack.c.l.b16 %v729
    %v817 = vunpack.c.h.b16 %v729
    %v818 = vunpack.c.l.b16 %v730
    %v819 = vunpack.c.h.b16 %v730
    %v820 = vunpack.c.l.b16 %v731
    %v821 = vunpack.c.h.b16 %v731
    %v822 = vunpack.c.l.b16 %v732
    %v823 = vunpack.c.h.b16 %v732
    %v824 = vunpack.c.l.b16 %v733
    %v825 = vunpack.c.h.b16 %v733
    %v826 = vunpack.c.l.b16 %v734
    %v827 = vunpack.c.h.b16 %v734
    %v828 = vunpack.c.l.b16 %v735
    %v829 = vunpack.c.h.b16 %v735
    %v830 = vunpack.c.l.b16 %v736
    %v831 = vunpack.c.h.b16 %v736
    %v832 = vunpack.c.l.b16 %v737
    %v833 = vunpack.c.h.b16 %v737
    %v834 = vpack.c.b16 %v772, %v770
    %v835 = vpack.c.b16 %v773, %v771
    %v836 = vpack.c.b16 %v776, %v774
    %v837 = vpack.c.b16 %v777, %v775
    %v838 = vpack.c.b16 %v780, %v778
    %v839 = vpack.c.b16 %v781, %v779
    %v840 = vpack.c.b16 %v784, %v782
    %v841 = vpack.c.b16 %v785, %v783
    %v842 = vpack.c.b16 %v788, %v786
    %v843 = vpack.c.b16 %v789, %v787
    %v844 = vpack.c.b16 %v792, %v790
    %v845 = vpack.c.b16 %v793, %v791
    %v846 = vpack.c.b16 %v796, %v794
    %v847 = vpack.c.b16 %v797, %v795
    %v848 = vpack.c.b16 %v800, %v798
    %v849 = vpack.c.b16 %v801, %v799
    %v850 = vpack.c.b16 %v804, %v802
    %v851 = vpack.c.b16 %v805, %v803
    %v852 = vpack.c.b16 %v808, %v806
    %v853 = vpack.c.b16 %v809, %v807
    %v854 = vpack.c.b16 %v812, %v810
    %v855 = vpack.c.b16 %v813, %v811
    %v856 = vpack.c.b16 %v816, %v814
    %v857 = vpack.c.b16 %v817, %v815
    %v858 = vpack.c.b16 %v820, %v818
    %v859 = vpack.c.b16 %v821, %v819
    %v860 = vpack.c.b16 %v824, %v822
    %v861 = vpack.c.b16 %v825, %v823
    %v862 = vpack.c.b16 %v828, %v826
    %v863 = vpack.c.b16 %v829, %v827
    %v864 = vpack.c.b16 %v832, %v830
    %v865 = vpack.c.b16 %v833, %v831
    %898 = vmatprep.subr.bf16.mxu0 %v835
    %899 = vmatpush1.bf16.msra.mxu0 %v834
    %900 = vmatprep.subr.bf16.mxu0 %v837
    %901 = vmatpush1.bf16.msra.mxu0 %v836
    %902 = vmatprep.subr.bf16.mxu0 %v839
    %903 = vmatpush1.bf16.msra.mxu0 %v838
    %904 = vmatprep.subr.bf16.mxu0 %v841
    %905 = vmatpush1.bf16.msra.mxu0 %v840
    %906 = vmatprep.subr.bf16.mxu0 %v843
    %907 = vmatpush1.bf16.msra.mxu0 %v842
    %908 = vmatprep.subr.bf16.mxu0 %v845
    %909 = vmatpush1.bf16.msra.mxu0 %v844
    %910 = vmatprep.subr.bf16.mxu0 %v847
    %911 = vmatpush1.bf16.msra.mxu0 %v846
    %912 = vmatprep.subr.bf16.mxu0 %v849
    %913 = vmatpush1.bf16.msra.mxu0 %v848
    %914 = vmatprep.subr.bf16.mxu0 %v851
    %915 = vmatpush1.bf16.msra.mxu0 %v850
    %916 = vmatprep.subr.bf16.mxu0 %v853
    %917 = vmatpush1.bf16.msra.mxu0 %v852
    %918 = vmatprep.subr.bf16.mxu0 %v855
    %919 = vmatpush1.bf16.msra.mxu0 %v854
    %920 = vmatprep.subr.bf16.mxu0 %v857
    %921 = vmatpush1.bf16.msra.mxu0 %v856
    %922 = vmatprep.subr.bf16.mxu0 %v859
    %923 = vmatpush1.bf16.msra.mxu0 %v858
    %924 = vmatprep.subr.bf16.mxu0 %v861
    %925 = vmatpush1.bf16.msra.mxu0 %v860
    %926 = vmatprep.subr.bf16.mxu0 %v863
    %927 = vmatpush1.bf16.msra.mxu0 %v862
    %928 = vmatprep.subr.bf16.mxu0 %v865
    %929 = vmatpush1.bf16.msra.mxu0 %v864
    %930 = vmatprep.mubr.bf16.mxu0 %v705
    %931 = vmatmul.mubr.bf16.gmra.mrb[0].mxu0 %v704
    %v932 = vpop.f32.mrb[0].mxu0
    %v933 = vadd.f32 0.0, %v932
    %v934 = vpop.f32.mrb[0].mxu0
    %v935 = vadd.f32 0.0, %v934
    %v936 = vpop.f32.mrb[0].mxu0
    %v937 = vpop.f32.mrb[0].mxu0
    %938 = vdwg.mxu0
    %v939 = vld [vmem:[%s5] sm:$0x3]
    %v941 = vlaneseq
    %v942 = vshrl.u32 %v941, 7
    %v943 = vsub.s32 0, %v942
    %v944 = vrot.slane %v939, %v943
    %v945 = vlaneseq
    %v946 = vshrl.u32 %v945, 7
    %v947 = vsub.s32 1, %v946
    %v948 = vrot.slane %v939, %v947
    %v951 = vmul.f32 %v933, %v944
    %v952 = vmul.f32 %v935, %v948
    %v953 = vld [vmem:[%s6] sm:$0x3]
    %v955 = vlaneseq
    %v956 = vshrl.u32 %v955, 7
    %v957 = vsub.s32 0, %v956
    %v958 = vrot.slane %v953, %v957
    %v959 = vlaneseq
    %v960 = vshrl.u32 %v959, 7
    %v961 = vsub.s32 1, %v960
    %v962 = vrot.slane %v953, %v961
    %v965 = vadd.f32 %v951, %v958
    %v966 = vadd.f32 %v952, %v962
    %vm967 = vcmp.ge.f32.partialorder %v965, 0.0
    %vm968 = vcmp.ge.f32.partialorder %v966, 0.0
    %v969 = vsel %vm967, 1.0, -1.0
    %v970 = vsel %vm968, 1.0, -1.0
    %v971 = vpack.c.bf16 %v969, %v969
    %v972 = vpack.c.bf16 %v970, %v970
    %v973 = vld [vmem:[#allocation8] sm:$0xff]
    %v974 = vld [vmem:[#allocation8 + $0x8] sm:$0xff]
    %v975 = vld [vmem:[#allocation8 + $0x10] sm:$0xff]
    %v976 = vld [vmem:[#allocation8 + $0x18] sm:$0xff]
    %v977 = vld [vmem:[#allocation8 + $0x20] sm:$0xff]
    %v978 = vld [vmem:[#allocation8 + $0x28] sm:$0xff]
    %v979 = vld [vmem:[#allocation8 + $0x30] sm:$0xff]
    %v980 = vld [vmem:[#allocation8 + $0x38] sm:$0xff]
    %v981 = vld [vmem:[#allocation8 + $0x40] sm:$0xff]
    %v982 = vld [vmem:[#allocation8 + $0x48] sm:$0xff]
    %v983 = vld [vmem:[#allocation8 + $0x50] sm:$0xff]
    %v984 = vld [vmem:[#allocation8 + $0x58] sm:$0xff]
    %v985 = vld [vmem:[#allocation8 + $0x60] sm:$0xff]
    %v986 = vld [vmem:[#allocation8 + $0x68] sm:$0xff]
    %v987 = vld [vmem:[#allocation8 + $0x70] sm:$0xff]
    %v988 = vld [vmem:[#allocation8 + $0x78] sm:$0xff]
    %v989 = vld [vmem:[#allocation8 + $0x80] sm:$0xff]
    %v990 = vld [vmem:[#allocation8 + $0x88] sm:$0xff]
    %v991 = vld [vmem:[#allocation8 + $0x90] sm:$0xff]
    %v992 = vld [vmem:[#allocation8 + $0x98] sm:$0xff]
    %v993 = vld [vmem:[#allocation8 + $0xa0] sm:$0xff]
    %v994 = vld [vmem:[#allocation8 + $0xa8] sm:$0xff]
    %v995 = vld [vmem:[#allocation8 + $0xb0] sm:$0xff]
    %v996 = vld [vmem:[#allocation8 + $0xb8] sm:$0xff]
    %v997 = vld [vmem:[#allocation8 + $0xc0] sm:$0xff]
    %v998 = vld [vmem:[#allocation8 + $0xc8] sm:$0xff]
    %v999 = vld [vmem:[#allocation8 + $0xd0] sm:$0xff]
    %v1000 = vld [vmem:[#allocation8 + $0xd8] sm:$0xff]
    %v1001 = vld [vmem:[#allocation8 + $0xe0] sm:$0xff]
    %v1002 = vld [vmem:[#allocation8 + $0xe8] sm:$0xff]
    %v1003 = vld [vmem:[#allocation8 + $0xf0] sm:$0xff]
    %v1004 = vld [vmem:[#allocation8 + $0xf8] sm:$0xff]
    %v1037 = vunpack.c.l.b16 %v973
    %v1038 = vunpack.c.h.b16 %v973
    %v1039 = vunpack.c.l.b16 %v974
    %v1040 = vunpack.c.h.b16 %v974
    %v1041 = vunpack.c.l.b16 %v975
    %v1042 = vunpack.c.h.b16 %v975
    %v1043 = vunpack.c.l.b16 %v976
    %v1044 = vunpack.c.h.b16 %v976
    %v1045 = vunpack.c.l.b16 %v977
    %v1046 = vunpack.c.h.b16 %v977
    %v1047 = vunpack.c.l.b16 %v978
    %v1048 = vunpack.c.h.b16 %v978
    %v1049 = vunpack.c.l.b16 %v979
    %v1050 = vunpack.c.h.b16 %v979
    %v1051 = vunpack.c.l.b16 %v980
    %v1052 = vunpack.c.h.b16 %v980
    %v1053 = vunpack.c.l.b16 %v981
    %v1054 = vunpack.c.h.b16 %v981
    %v1055 = vunpack.c.l.b16 %v982
    %v1056 = vunpack.c.h.b16 %v982
    %v1057 = vunpack.c.l.b16 %v983
    %v1058 = vunpack.c.h.b16 %v983
    %v1059 = vunpack.c.l.b16 %v984
    %v1060 = vunpack.c.h.b16 %v984
    %v1061 = vunpack.c.l.b16 %v985
    %v1062 = vunpack.c.h.b16 %v985
    %v1063 = vunpack.c.l.b16 %v986
    %v1064 = vunpack.c.h.b16 %v986
    %v1065 = vunpack.c.l.b16 %v987
    %v1066 = vunpack.c.h.b16 %v987
    %v1067 = vunpack.c.l.b16 %v988
    %v1068 = vunpack.c.h.b16 %v988
    %v1069 = vunpack.c.l.b16 %v989
    %v1070 = vunpack.c.h.b16 %v989
    %v1071 = vunpack.c.l.b16 %v990
    %v1072 = vunpack.c.h.b16 %v990
    %v1073 = vunpack.c.l.b16 %v991
    %v1074 = vunpack.c.h.b16 %v991
    %v1075 = vunpack.c.l.b16 %v992
    %v1076 = vunpack.c.h.b16 %v992
    %v1077 = vunpack.c.l.b16 %v993
    %v1078 = vunpack.c.h.b16 %v993
    %v1079 = vunpack.c.l.b16 %v994
    %v1080 = vunpack.c.h.b16 %v994
    %v1081 = vunpack.c.l.b16 %v995
    %v1082 = vunpack.c.h.b16 %v995
    %v1083 = vunpack.c.l.b16 %v996
    %v1084 = vunpack.c.h.b16 %v996
    %v1085 = vunpack.c.l.b16 %v997
    %v1086 = vunpack.c.h.b16 %v997
    %v1087 = vunpack.c.l.b16 %v998
    %v1088 = vunpack.c.h.b16 %v998
    %v1089 = vunpack.c.l.b16 %v999
    %v1090 = vunpack.c.h.b16 %v999
    %v1091 = vunpack.c.l.b16 %v1000
    %v1092 = vunpack.c.h.b16 %v1000
    %v1093 = vunpack.c.l.b16 %v1001
    %v1094 = vunpack.c.h.b16 %v1001
    %v1095 = vunpack.c.l.b16 %v1002
    %v1096 = vunpack.c.h.b16 %v1002
    %v1097 = vunpack.c.l.b16 %v1003
    %v1098 = vunpack.c.h.b16 %v1003
    %v1099 = vunpack.c.l.b16 %v1004
    %v1100 = vunpack.c.h.b16 %v1004
    %v1101 = vpack.c.b16 %v1039, %v1037
    %v1102 = vpack.c.b16 %v1040, %v1038
    %v1103 = vpack.c.b16 %v1043, %v1041
    %v1104 = vpack.c.b16 %v1044, %v1042
    %v1105 = vpack.c.b16 %v1047, %v1045
    %v1106 = vpack.c.b16 %v1048, %v1046
    %v1107 = vpack.c.b16 %v1051, %v1049
    %v1108 = vpack.c.b16 %v1052, %v1050
    %v1109 = vpack.c.b16 %v1055, %v1053
    %v1110 = vpack.c.b16 %v1056, %v1054
    %v1111 = vpack.c.b16 %v1059, %v1057
    %v1112 = vpack.c.b16 %v1060, %v1058
    %v1113 = vpack.c.b16 %v1063, %v1061
    %v1114 = vpack.c.b16 %v1064, %v1062
    %v1115 = vpack.c.b16 %v1067, %v1065
    %v1116 = vpack.c.b16 %v1068, %v1066
    %v1117 = vpack.c.b16 %v1071, %v1069
    %v1118 = vpack.c.b16 %v1072, %v1070
    %v1119 = vpack.c.b16 %v1075, %v1073
    %v1120 = vpack.c.b16 %v1076, %v1074
    %v1121 = vpack.c.b16 %v1079, %v1077
    %v1122 = vpack.c.b16 %v1080, %v1078
    %v1123 = vpack.c.b16 %v1083, %v1081
    %v1124 = vpack.c.b16 %v1084, %v1082
    %v1125 = vpack.c.b16 %v1087, %v1085
    %v1126 = vpack.c.b16 %v1088, %v1086
    %v1127 = vpack.c.b16 %v1091, %v1089
    %v1128 = vpack.c.b16 %v1092, %v1090
    %v1129 = vpack.c.b16 %v1095, %v1093
    %v1130 = vpack.c.b16 %v1096, %v1094
    %v1131 = vpack.c.b16 %v1099, %v1097
    %v1132 = vpack.c.b16 %v1100, %v1098
    %1165 = vmatprep.subr.bf16.mxu0 %v1102
    %1166 = vmatpush1.bf16.msra.mxu0 %v1101
    %1167 = vmatprep.subr.bf16.mxu0 %v1104
    %1168 = vmatpush1.bf16.msra.mxu0 %v1103
    %1169 = vmatprep.subr.bf16.mxu0 %v1106
    %1170 = vmatpush1.bf16.msra.mxu0 %v1105
    %1171 = vmatprep.subr.bf16.mxu0 %v1108
    %1172 = vmatpush1.bf16.msra.mxu0 %v1107
    %1173 = vmatprep.subr.bf16.mxu0 %v1110
    %1174 = vmatpush1.bf16.msra.mxu0 %v1109
    %1175 = vmatprep.subr.bf16.mxu0 %v1112
    %1176 = vmatpush1.bf16.msra.mxu0 %v1111
    %1177 = vmatprep.subr.bf16.mxu0 %v1114
    %1178 = vmatpush1.bf16.msra.mxu0 %v1113
    %1179 = vmatprep.subr.bf16.mxu0 %v1116
    %1180 = vmatpush1.bf16.msra.mxu0 %v1115
    %1181 = vmatprep.subr.bf16.mxu0 %v1118
    %1182 = vmatpush1.bf16.msra.mxu0 %v1117
    %1183 = vmatprep.subr.bf16.mxu0 %v1120
    %1184 = vmatpush1.bf16.msra.mxu0 %v1119
    %1185 = vmatprep.subr.bf16.mxu0 %v1122
    %1186 = vmatpush1.bf16.msra.mxu0 %v1121
    %1187 = vmatprep.subr.bf16.mxu0 %v1124
    %1188 = vmatpush1.bf16.msra.mxu0 %v1123
    %1189 = vmatprep.subr.bf16.mxu0 %v1126
    %1190 = vmatpush1.bf16.msra.mxu0 %v1125
    %1191 = vmatprep.subr.bf16.mxu0 %v1128
    %1192 = vmatpush1.bf16.msra.mxu0 %v1127
    %1193 = vmatprep.subr.bf16.mxu0 %v1130
    %1194 = vmatpush1.bf16.msra.mxu0 %v1129
    %1195 = vmatprep.subr.bf16.mxu0 %v1132
    %1196 = vmatpush1.bf16.msra.mxu0 %v1131
    %1197 = vmatprep.mubr.bf16.mxu0 %v972
    %1198 = vmatmul.mubr.bf16.gmra.mrb[0].mxu0 %v971
    %v1199 = vpop.f32.mrb[0].mxu0
    %v1200 = vadd.f32 0.0, %v1199
    %v1201 = vpop.f32.mrb[0].mxu0
    %v1202 = vadd.f32 0.0, %v1201
    %v1203 = vpop.f32.mrb[0].mxu0
    %v1204 = vpop.f32.mrb[0].mxu0
    %1205 = vdwg.mxu0
    %v1206 = vld [vmem:[%s8] sm:$0x3]
    %v1208 = vlaneseq
    %v1209 = vshrl.u32 %v1208, 7
    %v1210 = vsub.s32 0, %v1209
    %v1211 = vrot.slane %v1206, %v1210
    %v1212 = vlaneseq
    %v1213 = vshrl.u32 %v1212, 7
    %v1214 = vsub.s32 1, %v1213
    %v1215 = vrot.slane %v1206, %v1214
    %v1218 = vmul.f32 %v1200, %v1211
    %v1219 = vmul.f32 %v1202, %v1215
    %v1220 = vld [vmem:[%s9] sm:$0x3]
    %v1222 = vlaneseq
    %v1223 = vshrl.u32 %v1222, 7
    %v1224 = vsub.s32 0, %v1223
    %v1225 = vrot.slane %v1220, %v1224
    %v1226 = vlaneseq
    %v1227 = vshrl.u32 %v1226, 7
    %v1228 = vsub.s32 1, %v1227
    %v1229 = vrot.slane %v1220, %v1228
    %v1232 = vadd.f32 %v1218, %v1225
    %v1233 = vadd.f32 %v1219, %v1229
    %vm1234 = vcmp.ge.f32.partialorder %v1232, 0.0
    %vm1235 = vcmp.ge.f32.partialorder %v1233, 0.0
    %v1236 = vsel %vm1234, 1.0, -1.0
    %v1237 = vsel %vm1235, 1.0, -1.0
    %v1238 = vpack.c.bf16 %v1236, %v1236
    %v1239 = vpack.c.bf16 %v1237, %v1237
    %v1240 = vld [vmem:[#allocation10] sm:$0xff]
    %v1241 = vld [vmem:[#allocation10 + $0x8] sm:$0xff]
    %v1242 = vld [vmem:[#allocation10 + $0x10] sm:$0xff]
    %v1243 = vld [vmem:[#allocation10 + $0x18] sm:$0xff]
    %v1244 = vld [vmem:[#allocation10 + $0x20] sm:$0xff]
    %v1245 = vld [vmem:[#allocation10 + $0x28] sm:$0xff]
    %v1246 = vld [vmem:[#allocation10 + $0x30] sm:$0xff]
    %v1247 = vld [vmem:[#allocation10 + $0x38] sm:$0xff]
    %v1248 = vld [vmem:[#allocation10 + $0x40] sm:$0xff]
    %v1249 = vld [vmem:[#allocation10 + $0x48] sm:$0xff]
    %v1250 = vld [vmem:[#allocation10 + $0x50] sm:$0xff]
    %v1251 = vld [vmem:[#allocation10 + $0x58] sm:$0xff]
    %v1252 = vld [vmem:[#allocation10 + $0x60] sm:$0xff]
    %v1253 = vld [vmem:[#allocation10 + $0x68] sm:$0xff]
    %v1254 = vld [vmem:[#allocation10 + $0x70] sm:$0xff]
    %v1255 = vld [vmem:[#allocation10 + $0x78] sm:$0xff]
    %v1256 = vld [vmem:[#allocation10 + $0x80] sm:$0xff]
    %v1257 = vld [vmem:[#allocation10 + $0x88] sm:$0xff]
    %v1258 = vld [vmem:[#allocation10 + $0x90] sm:$0xff]
    %v1259 = vld [vmem:[#allocation10 + $0x98] sm:$0xff]
    %v1260 = vld [vmem:[#allocation10 + $0xa0] sm:$0xff]
    %v1261 = vld [vmem:[#allocation10 + $0xa8] sm:$0xff]
    %v1262 = vld [vmem:[#allocation10 + $0xb0] sm:$0xff]
    %v1263 = vld [vmem:[#allocation10 + $0xb8] sm:$0xff]
    %v1264 = vld [vmem:[#allocation10 + $0xc0] sm:$0xff]
    %v1265 = vld [vmem:[#allocation10 + $0xc8] sm:$0xff]
    %v1266 = vld [vmem:[#allocation10 + $0xd0] sm:$0xff]
    %v1267 = vld [vmem:[#allocation10 + $0xd8] sm:$0xff]
    %v1268 = vld [vmem:[#allocation10 + $0xe0] sm:$0xff]
    %v1269 = vld [vmem:[#allocation10 + $0xe8] sm:$0xff]
    %v1270 = vld [vmem:[#allocation10 + $0xf0] sm:$0xff]
    %v1271 = vld [vmem:[#allocation10 + $0xf8] sm:$0xff]
    %v1304 = vunpack.c.l.b16 %v1240
    %v1305 = vunpack.c.h.b16 %v1240
    %v1306 = vunpack.c.l.b16 %v1241
    %v1307 = vunpack.c.h.b16 %v1241
    %v1308 = vunpack.c.l.b16 %v1242
    %v1309 = vunpack.c.h.b16 %v1242
    %v1310 = vunpack.c.l.b16 %v1243
    %v1311 = vunpack.c.h.b16 %v1243
    %v1312 = vunpack.c.l.b16 %v1244
    %v1313 = vunpack.c.h.b16 %v1244
    %v1314 = vunpack.c.l.b16 %v1245
    %v1315 = vunpack.c.h.b16 %v1245
    %v1316 = vunpack.c.l.b16 %v1246
    %v1317 = vunpack.c.h.b16 %v1246
    %v1318 = vunpack.c.l.b16 %v1247
    %v1319 = vunpack.c.h.b16 %v1247
    %v1320 = vunpack.c.l.b16 %v1248
    %v1321 = vunpack.c.h.b16 %v1248
    %v1322 = vunpack.c.l.b16 %v1249
    %v1323 = vunpack.c.h.b16 %v1249
    %v1324 = vunpack.c.l.b16 %v1250
    %v1325 = vunpack.c.h.b16 %v1250
    %v1326 = vunpack.c.l.b16 %v1251
    %v1327 = vunpack.c.h.b16 %v1251
    %v1328 = vunpack.c.l.b16 %v1252
    %v1329 = vunpack.c.h.b16 %v1252
    %v1330 = vunpack.c.l.b16 %v1253
    %v1331 = vunpack.c.h.b16 %v1253
    %v1332 = vunpack.c.l.b16 %v1254
    %v1333 = vunpack.c.h.b16 %v1254
    %v1334 = vunpack.c.l.b16 %v1255
    %v1335 = vunpack.c.h.b16 %v1255
    %v1336 = vunpack.c.l.b16 %v1256
    %v1337 = vunpack.c.h.b16 %v1256
    %v1338 = vunpack.c.l.b16 %v1257
    %v1339 = vunpack.c.h.b16 %v1257
    %v1340 = vunpack.c.l.b16 %v1258
    %v1341 = vunpack.c.h.b16 %v1258
    %v1342 = vunpack.c.l.b16 %v1259
    %v1343 = vunpack.c.h.b16 %v1259
    %v1344 = vunpack.c.l.b16 %v1260
    %v1345 = vunpack.c.h.b16 %v1260
    %v1346 = vunpack.c.l.b16 %v1261
    %v1347 = vunpack.c.h.b16 %v1261
    %v1348 = vunpack.c.l.b16 %v1262
    %v1349 = vunpack.c.h.b16 %v1262
    %v1350 = vunpack.c.l.b16 %v1263
    %v1351 = vunpack.c.h.b16 %v1263
    %v1352 = vunpack.c.l.b16 %v1264
    %v1353 = vunpack.c.h.b16 %v1264
    %v1354 = vunpack.c.l.b16 %v1265
    %v1355 = vunpack.c.h.b16 %v1265
    %v1356 = vunpack.c.l.b16 %v1266
    %v1357 = vunpack.c.h.b16 %v1266
    %v1358 = vunpack.c.l.b16 %v1267
    %v1359 = vunpack.c.h.b16 %v1267
    %v1360 = vunpack.c.l.b16 %v1268
    %v1361 = vunpack.c.h.b16 %v1268
    %v1362 = vunpack.c.l.b16 %v1269
    %v1363 = vunpack.c.h.b16 %v1269
    %v1364 = vunpack.c.l.b16 %v1270
    %v1365 = vunpack.c.h.b16 %v1270
    %v1366 = vunpack.c.l.b16 %v1271
    %v1367 = vunpack.c.h.b16 %v1271
    %v1368 = vpack.c.b16 %v1306, %v1304
    %v1369 = vpack.c.b16 %v1307, %v1305
    %v1370 = vpack.c.b16 %v1310, %v1308
    %v1371 = vpack.c.b16 %v1311, %v1309
    %v1372 = vpack.c.b16 %v1314, %v1312
    %v1373 = vpack.c.b16 %v1315, %v1313
    %v1374 = vpack.c.b16 %v1318, %v1316
    %v1375 = vpack.c.b16 %v1319, %v1317
    %v1376 = vpack.c.b16 %v1322, %v1320
    %v1377 = vpack.c.b16 %v1323, %v1321
    %v1378 = vpack.c.b16 %v1326, %v1324
    %v1379 = vpack.c.b16 %v1327, %v1325
    %v1380 = vpack.c.b16 %v1330, %v1328
    %v1381 = vpack.c.b16 %v1331, %v1329
    %v1382 = vpack.c.b16 %v1334, %v1332
    %v1383 = vpack.c.b16 %v1335, %v1333
    %v1384 = vpack.c.b16 %v1338, %v1336
    %v1385 = vpack.c.b16 %v1339, %v1337
    %v1386 = vpack.c.b16 %v1342, %v1340
    %v1387 = vpack.c.b16 %v1343, %v1341
    %v1388 = vpack.c.b16 %v1346, %v1344
    %v1389 = vpack.c.b16 %v1347, %v1345
    %v1390 = vpack.c.b16 %v1350, %v1348
    %v1391 = vpack.c.b16 %v1351, %v1349
    %v1392 = vpack.c.b16 %v1354, %v1352
    %v1393 = vpack.c.b16 %v1355, %v1353
    %v1394 = vpack.c.b16 %v1358, %v1356
    %v1395 = vpack.c.b16 %v1359, %v1357
    %v1396 = vpack.c.b16 %v1362, %v1360
    %v1397 = vpack.c.b16 %v1363, %v1361
    %v1398 = vpack.c.b16 %v1366, %v1364
    %v1399 = vpack.c.b16 %v1367, %v1365
    %1432 = vmatprep.subr.bf16.mxu0 %v1369
    %1433 = vmatpush1.bf16.msra.mxu0 %v1368
    %1434 = vmatprep.subr.bf16.mxu0 %v1371
    %1435 = vmatpush1.bf16.msra.mxu0 %v1370
    %1436 = vmatprep.subr.bf16.mxu0 %v1373
    %1437 = vmatpush1.bf16.msra.mxu0 %v1372
    %1438 = vmatprep.subr.bf16.mxu0 %v1375
    %1439 = vmatpush1.bf16.msra.mxu0 %v1374
    %1440 = vmatprep.subr.bf16.mxu0 %v1377
    %1441 = vmatpush1.bf16.msra.mxu0 %v1376
    %1442 = vmatprep.subr.bf16.mxu0 %v1379
    %1443 = vmatpush1.bf16.msra.mxu0 %v1378
    %1444 = vmatprep.subr.bf16.mxu0 %v1381
    %1445 = vmatpush1.bf16.msra.mxu0 %v1380
    %1446 = vmatprep.subr.bf16.mxu0 %v1383
    %1447 = vmatpush1.bf16.msra.mxu0 %v1382
    %1448 = vmatprep.subr.bf16.mxu0 %v1385
    %1449 = vmatpush1.bf16.msra.mxu0 %v1384
    %1450 = vmatprep.subr.bf16.mxu0 %v1387
    %1451 = vmatpush1.bf16.msra.mxu0 %v1386
    %1452 = vmatprep.subr.bf16.mxu0 %v1389
    %1453 = vmatpush1.bf16.msra.mxu0 %v1388
    %1454 = vmatprep.subr.bf16.mxu0 %v1391
    %1455 = vmatpush1.bf16.msra.mxu0 %v1390
    %1456 = vmatprep.subr.bf16.mxu0 %v1393
    %1457 = vmatpush1.bf16.msra.mxu0 %v1392
    %1458 = vmatprep.subr.bf16.mxu0 %v1395
    %1459 = vmatpush1.bf16.msra.mxu0 %v1394
    %1460 = vmatprep.subr.bf16.mxu0 %v1397
    %1461 = vmatpush1.bf16.msra.mxu0 %v1396
    %1462 = vmatprep.subr.bf16.mxu0 %v1399
    %1463 = vmatpush1.bf16.msra.mxu0 %v1398
    %1464 = vmatprep.mubr.bf16.mxu0 %v1239
    %1465 = vmatmul.mubr.bf16.gmra.mrb[0].mxu0 %v1238
    %v1466 = vpop.f32.mrb[0].mxu0
    %v1467 = vadd.f32 0.0, %v1466
    %v1468 = vpop.f32.mrb[0].mxu0
    %v1469 = vadd.f32 0.0, %v1468
    %v1470 = vpop.f32.mrb[0].mxu0
    %v1471 = vpop.f32.mrb[0].mxu0
    %1472 = vdwg.mxu0
    %v1473 = vld [vmem:[%s11] sm:$0x3]
    %v1475 = vlaneseq
    %v1476 = vshrl.u32 %v1475, 7
    %v1477 = vsub.s32 0, %v1476
    %v1478 = vrot.slane %v1473, %v1477
    %v1479 = vlaneseq
    %v1480 = vshrl.u32 %v1479, 7
    %v1481 = vsub.s32 1, %v1480
    %v1482 = vrot.slane %v1473, %v1481
    %v1485 = vmul.f32 %v1467, %v1478
    %v1486 = vmul.f32 %v1469, %v1482
    %v1487 = vld [vmem:[%s12] sm:$0x3]
    %v1489 = vlaneseq
    %v1490 = vshrl.u32 %v1489, 7
    %v1491 = vsub.s32 0, %v1490
    %v1492 = vrot.slane %v1487, %v1491
    %v1493 = vlaneseq
    %v1494 = vshrl.u32 %v1493, 7
    %v1495 = vsub.s32 1, %v1494
    %v1496 = vrot.slane %v1487, %v1495
    %v1499 = vadd.f32 %v1485, %v1492
    %v1500 = vadd.f32 %v1486, %v1496
    %vm1501 = vcmp.ge.f32.partialorder %v1499, 0.0
    %vm1502 = vcmp.ge.f32.partialorder %v1500, 0.0
    %v1503 = vsel %vm1501, 1.0, -1.0
    %v1504 = vsel %vm1502, 1.0, -1.0
    %v1505 = vpack.c.bf16 %v1503, %v1503
    %v1506 = vpack.c.bf16 %v1504, %v1504
    %v1507 = vld [vmem:[#allocation11] sm:$0xff]
    %v1508 = vld [vmem:[#allocation11 + $0x8] sm:$0xff]
    %v1509 = vld [vmem:[#allocation11 + $0x10] sm:$0xff]
    %v1510 = vld [vmem:[#allocation11 + $0x18] sm:$0xff]
    %v1511 = vld [vmem:[#allocation11 + $0x20] sm:$0xff]
    %v1512 = vld [vmem:[#allocation11 + $0x28] sm:$0xff]
    %v1513 = vld [vmem:[#allocation11 + $0x30] sm:$0xff]
    %v1514 = vld [vmem:[#allocation11 + $0x38] sm:$0xff]
    %v1515 = vld [vmem:[#allocation11 + $0x40] sm:$0xff]
    %v1516 = vld [vmem:[#allocation11 + $0x48] sm:$0xff]
    %v1517 = vld [vmem:[#allocation11 + $0x50] sm:$0xff]
    %v1518 = vld [vmem:[#allocation11 + $0x58] sm:$0xff]
    %v1519 = vld [vmem:[#allocation11 + $0x60] sm:$0xff]
    %v1520 = vld [vmem:[#allocation11 + $0x68] sm:$0xff]
    %v1521 = vld [vmem:[#allocation11 + $0x70] sm:$0xff]
    %v1522 = vld [vmem:[#allocation11 + $0x78] sm:$0xff]
    %v1523 = vld [vmem:[#allocation11 + $0x80] sm:$0xff]
    %v1524 = vld [vmem:[#allocation11 + $0x88] sm:$0xff]
    %v1525 = vld [vmem:[#allocation11 + $0x90] sm:$0xff]
    %v1526 = vld [vmem:[#allocation11 + $0x98] sm:$0xff]
    %v1527 = vld [vmem:[#allocation11 + $0xa0] sm:$0xff]
    %v1528 = vld [vmem:[#allocation11 + $0xa8] sm:$0xff]
    %v1529 = vld [vmem:[#allocation11 + $0xb0] sm:$0xff]
    %v1530 = vld [vmem:[#allocation11 + $0xb8] sm:$0xff]
    %v1531 = vld [vmem:[#allocation11 + $0xc0] sm:$0xff]
    %v1532 = vld [vmem:[#allocation11 + $0xc8] sm:$0xff]
    %v1533 = vld [vmem:[#allocation11 + $0xd0] sm:$0xff]
    %v1534 = vld [vmem:[#allocation11 + $0xd8] sm:$0xff]
    %v1535 = vld [vmem:[#allocation11 + $0xe0] sm:$0xff]
    %v1536 = vld [vmem:[#allocation11 + $0xe8] sm:$0xff]
    %v1537 = vld [vmem:[#allocation11 + $0xf0] sm:$0xff]
    %v1538 = vld [vmem:[#allocation11 + $0xf8] sm:$0xff]
    %v1571 = vunpack.c.l.b16 %v1507
    %v1572 = vunpack.c.h.b16 %v1507
    %v1573 = vunpack.c.l.b16 %v1508
    %v1574 = vunpack.c.h.b16 %v1508
    %v1575 = vunpack.c.l.b16 %v1509
    %v1576 = vunpack.c.h.b16 %v1509
    %v1577 = vunpack.c.l.b16 %v1510
    %v1578 = vunpack.c.h.b16 %v1510
    %v1579 = vunpack.c.l.b16 %v1511
    %v1580 = vunpack.c.h.b16 %v1511
    %v1581 = vunpack.c.l.b16 %v1512
    %v1582 = vunpack.c.h.b16 %v1512
    %v1583 = vunpack.c.l.b16 %v1513
    %v1584 = vunpack.c.h.b16 %v1513
    %v1585 = vunpack.c.l.b16 %v1514
    %v1586 = vunpack.c.h.b16 %v1514
    %v1587 = vunpack.c.l.b16 %v1515
    %v1588 = vunpack.c.h.b16 %v1515
    %v1589 = vunpack.c.l.b16 %v1516
    %v1590 = vunpack.c.h.b16 %v1516
    %v1591 = vunpack.c.l.b16 %v1517
    %v1592 = vunpack.c.h.b16 %v1517
    %v1593 = vunpack.c.l.b16 %v1518
    %v1594 = vunpack.c.h.b16 %v1518
    %v1595 = vunpack.c.l.b16 %v1519
    %v1596 = vunpack.c.h.b16 %v1519
    %v1597 = vunpack.c.l.b16 %v1520
    %v1598 = vunpack.c.h.b16 %v1520
    %v1599 = vunpack.c.l.b16 %v1521
    %v1600 = vunpack.c.h.b16 %v1521
    %v1601 = vunpack.c.l.b16 %v1522
    %v1602 = vunpack.c.h.b16 %v1522
    %v1603 = vunpack.c.l.b16 %v1523
    %v1604 = vunpack.c.h.b16 %v1523
    %v1605 = vunpack.c.l.b16 %v1524
    %v1606 = vunpack.c.h.b16 %v1524
    %v1607 = vunpack.c.l.b16 %v1525
    %v1608 = vunpack.c.h.b16 %v1525
    %v1609 = vunpack.c.l.b16 %v1526
    %v1610 = vunpack.c.h.b16 %v1526
    %v1611 = vunpack.c.l.b16 %v1527
    %v1612 = vunpack.c.h.b16 %v1527
    %v1613 = vunpack.c.l.b16 %v1528
    %v1614 = vunpack.c.h.b16 %v1528
    %v1615 = vunpack.c.l.b16 %v1529
    %v1616 = vunpack.c.h.b16 %v1529
    %v1617 = vunpack.c.l.b16 %v1530
    %v1618 = vunpack.c.h.b16 %v1530
    %v1619 = vunpack.c.l.b16 %v1531
    %v1620 = vunpack.c.h.b16 %v1531
    %v1621 = vunpack.c.l.b16 %v1532
    %v1622 = vunpack.c.h.b16 %v1532
    %v1623 = vunpack.c.l.b16 %v1533
    %v1624 = vunpack.c.h.b16 %v1533
    %v1625 = vunpack.c.l.b16 %v1534
    %v1626 = vunpack.c.h.b16 %v1534
    %v1627 = vunpack.c.l.b16 %v1535
    %v1628 = vunpack.c.h.b16 %v1535
    %v1629 = vunpack.c.l.b16 %v1536
    %v1630 = vunpack.c.h.b16 %v1536
    %v1631 = vunpack.c.l.b16 %v1537
    %v1632 = vunpack.c.h.b16 %v1537
    %v1633 = vunpack.c.l.b16 %v1538
    %v1634 = vunpack.c.h.b16 %v1538
    %v1635 = vpack.c.b16 %v1573, %v1571
    %v1636 = vpack.c.b16 %v1574, %v1572
    %v1637 = vpack.c.b16 %v1577, %v1575
    %v1638 = vpack.c.b16 %v1578, %v1576
    %v1639 = vpack.c.b16 %v1581, %v1579
    %v1640 = vpack.c.b16 %v1582, %v1580
    %v1641 = vpack.c.b16 %v1585, %v1583
    %v1642 = vpack.c.b16 %v1586, %v1584
    %v1643 = vpack.c.b16 %v1589, %v1587
    %v1644 = vpack.c.b16 %v1590, %v1588
    %v1645 = vpack.c.b16 %v1593, %v1591
    %v1646 = vpack.c.b16 %v1594, %v1592
    %v1647 = vpack.c.b16 %v1597, %v1595
    %v1648 = vpack.c.b16 %v1598, %v1596
    %v1649 = vpack.c.b16 %v1601, %v1599
    %v1650 = vpack.c.b16 %v1602, %v1600
    %v1651 = vpack.c.b16 %v1605, %v1603
    %v1652 = vpack.c.b16 %v1606, %v1604
    %v1653 = vpack.c.b16 %v1609, %v1607
    %v1654 = vpack.c.b16 %v1610, %v1608
    %v1655 = vpack.c.b16 %v1613, %v1611
    %v1656 = vpack.c.b16 %v1614, %v1612
    %v1657 = vpack.c.b16 %v1617, %v1615
    %v1658 = vpack.c.b16 %v1618, %v1616
    %v1659 = vpack.c.b16 %v1621, %v1619
    %v1660 = vpack.c.b16 %v1622, %v1620
    %v1661 = vpack.c.b16 %v1625, %v1623
    %v1662 = vpack.c.b16 %v1626, %v1624
    %v1663 = vpack.c.b16 %v1629, %v1627
    %v1664 = vpack.c.b16 %v1630, %v1628
    %v1665 = vpack.c.b16 %v1633, %v1631
    %v1666 = vpack.c.b16 %v1634, %v1632
    %1699 = vmatprep.subr.bf16.mxu0 %v1636
    %1700 = vmatpush1.bf16.msra.mxu0 %v1635
    %1701 = vmatprep.subr.bf16.mxu0 %v1638
    %1702 = vmatpush1.bf16.msra.mxu0 %v1637
    %1703 = vmatprep.subr.bf16.mxu0 %v1640
    %1704 = vmatpush1.bf16.msra.mxu0 %v1639
    %1705 = vmatprep.subr.bf16.mxu0 %v1642
    %1706 = vmatpush1.bf16.msra.mxu0 %v1641
    %1707 = vmatprep.subr.bf16.mxu0 %v1644
    %1708 = vmatpush1.bf16.msra.mxu0 %v1643
    %1709 = vmatprep.subr.bf16.mxu0 %v1646
    %1710 = vmatpush1.bf16.msra.mxu0 %v1645
    %1711 = vmatprep.subr.bf16.mxu0 %v1648
    %1712 = vmatpush1.bf16.msra.mxu0 %v1647
    %1713 = vmatprep.subr.bf16.mxu0 %v1650
    %1714 = vmatpush1.bf16.msra.mxu0 %v1649
    %1715 = vmatprep.subr.bf16.mxu0 %v1652
    %1716 = vmatpush1.bf16.msra.mxu0 %v1651
    %1717 = vmatprep.subr.bf16.mxu0 %v1654
    %1718 = vmatpush1.bf16.msra.mxu0 %v1653
    %1719 = vmatprep.subr.bf16.mxu0 %v1656
    %1720 = vmatpush1.bf16.msra.mxu0 %v1655
    %1721 = vmatprep.subr.bf16.mxu0 %v1658
    %1722 = vmatpush1.bf16.msra.mxu0 %v1657
    %1723 = vmatprep.subr.bf16.mxu0 %v1660
    %1724 = vmatpush1.bf16.msra.mxu0 %v1659
    %1725 = vmatprep.subr.bf16.mxu0 %v1662
    %1726 = vmatpush1.bf16.msra.mxu0 %v1661
    %1727 = vmatprep.subr.bf16.mxu0 %v1664
    %1728 = vmatpush1.bf16.msra.mxu0 %v1663
    %1729 = vmatprep.subr.bf16.mxu0 %v1666
    %1730 = vmatpush1.bf16.msra.mxu0 %v1665
    %1731 = vmatprep.mubr.bf16.mxu0 %v1506
    %1732 = vmatmul.mubr.bf16.gmra.mrb[0].mxu0 %v1505
    %v1733 = vpop.f32.mrb[0].mxu0
    %v1734 = vadd.f32 0.0, %v1733
    %v1735 = vpop.f32.mrb[0].mxu0
    %v1736 = vadd.f32 0.0, %v1735
    %v1737 = vpop.f32.mrb[0].mxu0
    %v1738 = vpop.f32.mrb[0].mxu0
    %1739 = vdwg.mxu0
    %v1740 = vld [vmem:[%s14] sm:$0x3]
    %v1742 = vlaneseq
    %v1743 = vshrl.u32 %v1742, 7
    %v1744 = vsub.s32 0, %v1743
    %v1745 = vrot.slane %v1740, %v1744
    %v1746 = vlaneseq
    %v1747 = vshrl.u32 %v1746, 7
    %v1748 = vsub.s32 1, %v1747
    %v1749 = vrot.slane %v1740, %v1748
    %v1752 = vmul.f32 %v1734, %v1745
    %v1753 = vmul.f32 %v1736, %v1749
    %v1754 = vld [vmem:[%s15] sm:$0x3]
    %v1756 = vlaneseq
    %v1757 = vshrl.u32 %v1756, 7
    %v1758 = vsub.s32 0, %v1757
    %v1759 = vrot.slane %v1754, %v1758
    %v1760 = vlaneseq
    %v1761 = vshrl.u32 %v1760, 7
    %v1762 = vsub.s32 1, %v1761
    %v1763 = vrot.slane %v1754, %v1762
    %v1766 = vadd.f32 %v1752, %v1759
    %v1767 = vadd.f32 %v1753, %v1763
    %vm1768 = vcmp.ge.f32.partialorder %v1766, 0.0
    %vm1769 = vcmp.ge.f32.partialorder %v1767, 0.0
    %v1770 = vsel %vm1768, 1.0, -1.0
    %v1771 = vsel %vm1769, 1.0, -1.0
    %v1772 = vpack.c.bf16 %v1770, %v1770
    %v1773 = vpack.c.bf16 %v1771, %v1771
    %v1774 = vld [vmem:[#allocation13] sm:$0xf]
    %v1775 = vld [vmem:[#allocation13 + $0x4] sm:$0xf]
    %v1776 = vld [vmem:[#allocation13 + $0x8] sm:$0xf]
    %v1777 = vld [vmem:[#allocation13 + $0xc] sm:$0xf]
    %v1778 = vld [vmem:[#allocation13 + $0x10] sm:$0xf]
    %v1779 = vld [vmem:[#allocation13 + $0x14] sm:$0xf]
    %v1780 = vld [vmem:[#allocation13 + $0x18] sm:$0xf]
    %v1781 = vld [vmem:[#allocation13 + $0x1c] sm:$0xf]
    %v1782 = vld [vmem:[#allocation13 + $0x20] sm:$0xf]
    %v1783 = vld [vmem:[#allocation13 + $0x24] sm:$0xf]
    %v1784 = vld [vmem:[#allocation13 + $0x28] sm:$0xf]
    %v1785 = vld [vmem:[#allocation13 + $0x2c] sm:$0xf]
    %v1786 = vld [vmem:[#allocation13 + $0x30] sm:$0xf]
    %v1787 = vld [vmem:[#allocation13 + $0x34] sm:$0xf]
    %v1788 = vld [vmem:[#allocation13 + $0x38] sm:$0xf]
    %v1789 = vld [vmem:[#allocation13 + $0x3c] sm:$0xf]
    %v1790 = vld [vmem:[#allocation13 + $0x40] sm:$0xf]
    %v1791 = vld [vmem:[#allocation13 + $0x44] sm:$0xf]
    %v1792 = vld [vmem:[#allocation13 + $0x48] sm:$0xf]
    %v1793 = vld [vmem:[#allocation13 + $0x4c] sm:$0xf]
    %v1794 = vld [vmem:[#allocation13 + $0x50] sm:$0xf]
    %v1795 = vld [vmem:[#allocation13 + $0x54] sm:$0xf]
    %v1796 = vld [vmem:[#allocation13 + $0x58] sm:$0xf]
    %v1797 = vld [vmem:[#allocation13 + $0x5c] sm:$0xf]
    %v1798 = vld [vmem:[#allocation13 + $0x60] sm:$0xf]
    %v1799 = vld [vmem:[#allocation13 + $0x64] sm:$0xf]
    %v1800 = vld [vmem:[#allocation13 + $0x68] sm:$0xf]
    %v1801 = vld [vmem:[#allocation13 + $0x6c] sm:$0xf]
    %v1802 = vld [vmem:[#allocation13 + $0x70] sm:$0xf]
    %v1803 = vld [vmem:[#allocation13 + $0x74] sm:$0xf]
    %v1804 = vld [vmem:[#allocation13 + $0x78] sm:$0xf]
    %v1805 = vld [vmem:[#allocation13 + $0x7c] sm:$0xf]
    %v1838 = vunpack.c.l.b16 %v1774
    %v1839 = vunpack.c.l.b16 %v1775
    %v1840 = vunpack.c.l.b16 %v1776
    %v1841 = vunpack.c.l.b16 %v1777
    %v1842 = vunpack.c.l.b16 %v1778
    %v1843 = vunpack.c.l.b16 %v1779
    %v1844 = vunpack.c.l.b16 %v1780
    %v1845 = vunpack.c.l.b16 %v1781
    %v1846 = vunpack.c.l.b16 %v1782
    %v1847 = vunpack.c.l.b16 %v1783
    %v1848 = vunpack.c.l.b16 %v1784
    %v1849 = vunpack.c.l.b16 %v1785
    %v1850 = vunpack.c.l.b16 %v1786
    %v1851 = vunpack.c.l.b16 %v1787
    %v1852 = vunpack.c.l.b16 %v1788
    %v1853 = vunpack.c.l.b16 %v1789
    %v1854 = vunpack.c.l.b16 %v1790
    %v1855 = vunpack.c.l.b16 %v1791
    %v1856 = vunpack.c.l.b16 %v1792
    %v1857 = vunpack.c.l.b16 %v1793
    %v1858 = vunpack.c.l.b16 %v1794
    %v1859 = vunpack.c.l.b16 %v1795
    %v1860 = vunpack.c.l.b16 %v1796
    %v1861 = vunpack.c.l.b16 %v1797
    %v1862 = vunpack.c.l.b16 %v1798
    %v1863 = vunpack.c.l.b16 %v1799
    %v1864 = vunpack.c.l.b16 %v1800
    %v1865 = vunpack.c.l.b16 %v1801
    %v1866 = vunpack.c.l.b16 %v1802
    %v1867 = vunpack.c.l.b16 %v1803
    %v1868 = vunpack.c.l.b16 %v1804
    %v1869 = vunpack.c.l.b16 %v1805
    %v1870 = vpack.c.b16 %v1839, %v1838
    %v1871 = vpack.c.b16 %v1841, %v1840
    %v1872 = vpack.c.b16 %v1843, %v1842
    %v1873 = vpack.c.b16 %v1845, %v1844
    %v1874 = vpack.c.b16 %v1847, %v1846
    %v1875 = vpack.c.b16 %v1849, %v1848
    %v1876 = vpack.c.b16 %v1851, %v1850
    %v1877 = vpack.c.b16 %v1853, %v1852
    %v1878 = vpack.c.b16 %v1855, %v1854
    %v1879 = vpack.c.b16 %v1857, %v1856
    %v1880 = vpack.c.b16 %v1859, %v1858
    %v1881 = vpack.c.b16 %v1861, %v1860
    %v1882 = vpack.c.b16 %v1863, %v1862
    %v1883 = vpack.c.b16 %v1865, %v1864
    %v1884 = vpack.c.b16 %v1867, %v1866
    %v1885 = vpack.c.b16 %v1869, %v1868
    %1902 = vmatprep.subr.bf16.mxu0 0
    %1903 = vmatpush1.bf16.msra.mxu0 %v1870
    %1904 = vmatprep.subr.bf16.mxu0 0
    %1905 = vmatpush1.bf16.msra.mxu0 %v1871
    %1906 = vmatprep.subr.bf16.mxu0 0
    %1907 = vmatpush1.bf16.msra.mxu0 %v1872
    %1908 = vmatprep.subr.bf16.mxu0 0
    %1909 = vmatpush1.bf16.msra.mxu0 %v1873
    %1910 = vmatprep.subr.bf16.mxu0 0
    %1911 = vmatpush1.bf16.msra.mxu0 %v1874
    %1912 = vmatprep.subr.bf16.mxu0 0
    %1913 = vmatpush1.bf16.msra.mxu0 %v1875
    %1914 = vmatprep.subr.bf16.mxu0 0
    %1915 = vmatpush1.bf16.msra.mxu0 %v1876
    %1916 = vmatprep.subr.bf16.mxu0 0
    %1917 = vmatpush1.bf16.msra.mxu0 %v1877
    %1918 = vmatprep.subr.bf16.mxu0 0
    %1919 = vmatpush1.bf16.msra.mxu0 %v1878
    %1920 = vmatprep.subr.bf16.mxu0 0
    %1921 = vmatpush1.bf16.msra.mxu0 %v1879
    %1922 = vmatprep.subr.bf16.mxu0 0
    %1923 = vmatpush1.bf16.msra.mxu0 %v1880
    %1924 = vmatprep.subr.bf16.mxu0 0
    %1925 = vmatpush1.bf16.msra.mxu0 %v1881
    %1926 = vmatprep.subr.bf16.mxu0 0
    %1927 = vmatpush1.bf16.msra.mxu0 %v1882
    %1928 = vmatprep.subr.bf16.mxu0 0
    %1929 = vmatpush1.bf16.msra.mxu0 %v1883
    %1930 = vmatprep.subr.bf16.mxu0 0
    %1931 = vmatpush1.bf16.msra.mxu0 %v1884
    %1932 = vmatprep.subr.bf16.mxu0 0
    %1933 = vmatpush1.bf16.msra.mxu0 %v1885
    %1934 = vmatprep.mubr.bf16.mxu0 %v1773
    %1935 = vmatmul.mubr.bf16.gmra.mrb[0].mxu0 %v1772
    %v1936 = vpop.f32.mrb[0].mxu0
    %v1937 = vadd.f32 0.0, %v1936
    %v1938 = vpop.f32.mrb[0].mxu0
    %v1939 = vpop.f32.mrb[0].mxu0
    %v1940 = vpop.f32.mrb[0].mxu0
    %1941 = vdwg.mxu0
    %v1942 = vld [vmem:[%s17] sm:$0x1]
    %v1944 = vlaneseq
    %v1945 = vshrl.u32 %v1944, 7
    %v1946 = vsub.s32 0, %v1945
    %v1947 = vrot.slane %v1942, %v1946
    %v1949 = vmul.f32 %v1937, %v1947
    %v1950 = vld [vmem:[%s18] sm:$0x1]
    %v1952 = vlaneseq
    %v1953 = vshrl.u32 %v1952, 7
    %v1954 = vsub.s32 0, %v1953
    %v1955 = vrot.slane %v1950, %v1954
    %v1957 = vadd.f32 %v1949, %v1955
    %1958 = vmax.xlane.f32.xlu0 %v1957
    %v1959 = vpop.xlane.xlu0 %1958
    %v1960 = vsub.f32 %v1957, %v1959
    %v1961 = vmul.f32 %v1960, 1.442695
    %v1962 = vpow.pop %v1961
    %1963 = vadd.xlane.f32.xlu0 %v1962
    %v1964 = vpop.xlane.xlu0 %1963
    %v1965 = vrcp.pop %v1964
    %v1966 = vmul.f32 %v1962, %v1965
    %1967 = vst [vmem:[#allocation14] sm:$0xff] %v1966
    // Predicated region
    $region106: #{tpu_custom_call.1} parent=1 // pred_check
      _
    $region107: #{tpu_custom_call.1} parent=1 // pred_check_branch
      %1969 = sbr.rel (0) target = $region109
    $region108: #{tpu_custom_call.1} parent=1 // pred_region
      %s1971 = ssub.s32 128, 128
      %1972 = vsyncadd [#allocation4], %s1971
      %s1974 = sshll.u32 [#allocation14], 4
      %s1975 = int_to_ptr.vmem [resolvable:$true] %s1974
      %1977 = dma.vmem_to_hbm [thread:$0]  %s1975, 128, %s19, [#allocation4]
    $region109: #{tpu_custom_call.1} parent=1 // pred_fallthru
      _
    // Predicated region
    $region110: #{tpu_custom_call.1} parent=1 // pred_check
      _
    $region111: #{tpu_custom_call.1} parent=1 // pred_check_branch
      %1979 = sbr.rel (0) target = $region113
    $region112: #{tpu_custom_call.1} parent=1 // pred_region
      %1980 = dma.done [#allocation4], 128
    $region113: #{tpu_custom_call.1} parent=1 // pred_fallthru
      _
    %1981 = vsyncpa [#allocation3], 1
    %1982 = vsyncpa [#allocation6], 1
    %1983 = vsyncpa [#allocation9], 1
    %1984 = vsyncpa [#allocation12], 1
    %1985 = vsyncpa [#allocation4], 1

</llo_original>
